<compile_context>
chip_gen: v7x
topology: tpu7x:2x2x1
jax: 0.10.0
libtpu: 0.0.40
codegen_flags: <defaults>
</compile_context>

<pallas_src>
import functools
import math

import jax
import jax.numpy as jnp
from jax.experimental import pallas as pl
from jax.experimental.pallas import tpu as pltpu

# ----------------------- config (small, BERT-shaped) -----------------------
VOCAB = 100
TYPE_VOCAB = 2
MAX_POS = 16
HIDDEN = 32
N_HEADS = 2
HEAD_DIM = HIDDEN // N_HEADS
INTERMEDIATE = 128
N_LAYERS = 2
NUM_LABELS = 3
CLS_PAD = 128          # lane-dense classifier output width (sliced to NUM_LABELS in glue)
LN_EPS = 1e-12
BATCH = 2
SEQ = 8


# ------------------------------ fused kernel -------------------------------
def _bert_kernel(emb_ref, bias_ref, emb_g_ref, emb_b_ref,
                 wqkv_ref, bqkv_ref, wo_ref, bo_ref, ln1_g_ref, ln1_b_ref,
                 w1_ref, b1_ref, w2_ref, b2_ref, ln2_g_ref, ln2_b_ref,
                 pool_w_ref, pool_b_ref, cls_w_ref, cls_b_ref,
                 out_ref, x_ref,
                 *, batch, seq, n_heads, head_dim, scale, eps):
    l = pl.program_id(0)
    hidden = n_heads * head_dim

    def layernorm(v, g, b):
        mean = jnp.mean(v, axis=-1, keepdims=True)
        var = jnp.mean(jnp.square(v - mean), axis=-1, keepdims=True)
        return (v - mean) * jax.lax.rsqrt(var + eps) * g + b

    # ---- layer 0: initialise resident hidden state with embedding LayerNorm ----
    @pl.when(l == 0)
    def _():
        x_ref[...] = layernorm(emb_ref[...], emb_g_ref[...], emb_b_ref[...])
        # dropout(0.1) after embeddings: identity in eval mode

    x = x_ref[...]                            # (B*S, H) f32, resident across the layer axis

    # ---- self-attention: one fused QKV matmul over all B*S rows (bf16 -> f32 acc) ----
    qkv = jnp.dot(x.astype(jnp.bfloat16), wqkv_ref[0],
                  preferred_element_type=jnp.float32) + bqkv_ref[0]        # (B*S, 3H)
    qkv3 = qkv.reshape(batch, seq, 3 * hidden)                             # (B, S, 3H)

    # attention-mask bias: broadcast ONCE per layer (hoisted out of the head loop)
    bias = jnp.broadcast_to(bias_ref[...], (batch, seq, seq))              # (B, S, S) f32

    ctx_heads = []
    for h in range(n_heads):
        lo = h * head_dim
        qh = qkv3[:, :, lo:lo + head_dim]                                  # (B, S, D)
        kh = qkv3[:, :, hidden + lo:hidden + lo + head_dim]                # (B, S, D)
        vh = qkv3[:, :, 2 * hidden + lo:2 * hidden + lo + head_dim]        # (B, S, D)
        s = jnp.einsum('bqd,bkd->bqk', qh.astype(jnp.bfloat16), kh.astype(jnp.bfloat16),
                       preferred_element_type=jnp.float32)                 # (B, S, S) f32
        s = s * scale + bias
        m = jnp.max(s, axis=-1, keepdims=True)
        p = jnp.exp(s - m)
        denom = jnp.sum(p, axis=-1, keepdims=True)
        p = p * pl.reciprocal(denom, approx=True)                          # EUP-slot divide
        ctx_heads.append(jnp.einsum('bqk,bkd->bqd', p.astype(jnp.bfloat16),
                                    vh.astype(jnp.bfloat16),
                                    preferred_element_type=jnp.float32))
    # TODO(synk): per-head lane slices/concat remain (head_dim < 128); a batched
    # heads-axis dot_general needs a mid-dim transpose that Mosaic lowers poorly at
    # this tiny scale, so it is kept as a 2-iteration unrolled loop here.
    ctx = jnp.concatenate(ctx_heads, axis=-1).reshape(batch * seq, hidden)  # (B*S, H)

    attn_out = jnp.dot(ctx.astype(jnp.bfloat16), wo_ref[0],
                       preferred_element_type=jnp.float32) + bo_ref[0]
    x = layernorm(attn_out + x, ln1_g_ref[0], ln1_b_ref[0])                # add & LN (f32)

    # ---- feed-forward (flattened B*S rows) ----
    h1 = jnp.dot(x.astype(jnp.bfloat16), w1_ref[0],
                 preferred_element_type=jnp.float32) + b1_ref[0]
    # TODO(synk): HF BERT uses exact (erf) GELU; tanh approximation used for Mosaic lowering.
    h1 = jax.nn.gelu(h1, approximate=True)
    ffn = jnp.dot(h1.astype(jnp.bfloat16), w2_ref[0],
                  preferred_element_type=jnp.float32) + b2_ref[0]
    x = layernorm(ffn + x, ln2_g_ref[0], ln2_b_ref[0])                     # add & LN (f32)

    x_ref[...] = x

    # ---- last layer: pooler (tanh on CLS) + classifier, lane-dense write ----
    @pl.when(l == pl.num_programs(0) - 1)
    def _():
        cls_tok = x.reshape(batch, seq, hidden)[:, 0, :]                   # (B, H) CLS rows
        pooled = jnp.tanh(
            jnp.dot(cls_tok.astype(jnp.bfloat16), pool_w_ref[...],
                    preferred_element_type=jnp.float32) + pool_b_ref[...])
        # dropout(0.1) before classifier: identity in eval mode
        logits = (jnp.dot(pooled.astype(jnp.bfloat16), cls_w_ref[...],
                          preferred_element_type=jnp.float32) + cls_b_ref[...])  # (B, 128)
        out_ref[...] = logits


def _fused_bert(params, emb2d, mask_bias, batch, seq):
    """emb2d: (B*S, H) f32 embedding sum (pre-LN); mask_bias: (B, 1, S) additive f32 bias.
    Returns lane-dense padded logits of shape (B, CLS_PAD)."""
    BS, H = emb2d.shape
    L = params["wqkv"].shape[0]
    I = params["w1"].shape[-1]

    kernel = functools.partial(
        _bert_kernel, batch=batch, seq=seq, n_heads=N_HEADS, head_dim=HEAD_DIM,
        scale=1.0 / math.sqrt(HEAD_DIM), eps=LN_EPS)

    l_idx = lambda l: (l, 0, 0)       # per-layer stacked weights (streamed once each)
    const2 = lambda l: (0, 0)         # shared / whole-array blocks (2-D)
    const3 = lambda l: (0, 0, 0)      # shared / whole-array blocks (3-D)

    in_specs = [
        pl.BlockSpec((BS, H), const2),             # emb (B*S, H)
        pl.BlockSpec((batch, 1, seq), const3),     # mask bias
        pl.BlockSpec((1, H), const2),              # emb_ln_g
        pl.BlockSpec((1, H), const2),              # emb_ln_b
        pl.BlockSpec((1, H, 3 * H), l_idx),        # wqkv (fused Q|K|V, bf16)
        pl.BlockSpec((1, 1, 3 * H), l_idx),        # bqkv
        pl.BlockSpec((1, H, H), l_idx),            # wo (bf16)
        pl.BlockSpec((1, 1, H), l_idx),            # bo
        pl.BlockSpec((1, 1, H), l_idx),            # ln1_g
        pl.BlockSpec((1, 1, H), l_idx),            # ln1_b
        pl.BlockSpec((1, H, I), l_idx),            # w1 (bf16)
        pl.BlockSpec((1, 1, I), l_idx),            # b1
        pl.BlockSpec((1, I, H), l_idx),            # w2 (bf16)
        pl.BlockSpec((1, 1, H), l_idx),            # b2
        pl.BlockSpec((1, 1, H), l_idx),            # ln2_g
        pl.BlockSpec((1, 1, H), l_idx),            # ln2_b
        pl.BlockSpec((H, H), const2),              # pooler_w (bf16)
        pl.BlockSpec((1, H), const2),              # pooler_b
        pl.BlockSpec((H, CLS_PAD), const2),        # cls_w (bf16, padded to 128 lanes)
        pl.BlockSpec((1, CLS_PAD), const2),        # cls_b (padded)
    ]

    return pl.pallas_call(
        kernel,
        out_shape=jax.ShapeDtypeStruct((batch, CLS_PAD), jnp.float32),
        grid_spec=pltpu.PrefetchScalarGridSpec(
            num_scalar_prefetch=0,
            grid=(L,),                                          # layer-major, batch in-block
            in_specs=in_specs,
            out_specs=pl.BlockSpec((batch, CLS_PAD), const2),
            scratch_shapes=[pltpu.VMEM((BS, H), jnp.float32)],  # resident hidden state
        ),
        compiler_params=pltpu.CompilerParams(
            dimension_semantics=("arbitrary",),
            # Explicit scoped-VMEM budget; toy shapes need <1 MiB, re-derive per chip at
            # bert-base scale (bf16 weights + Buffered(2) fit v7x's 64 MiB).
            vmem_limit_bytes=32 * 1024 * 1024),
    )(emb2d, mask_bias,
      params["emb_ln_g"], params["emb_ln_b"],
      params["wqkv"], params["bqkv"], params["wo"], params["bo"],
      params["ln1_g"], params["ln1_b"],
      params["w1"], params["b1"], params["w2"], params["b2"],
      params["ln2_g"], params["ln2_b"],
      params["pooler_w"], params["pooler_b"],
      params["cls_w_pad"], params["cls_b_pad"])


# --------------------------- deterministic params --------------------------
def init_params(key):
    std = 0.02
    keys = iter(jax.random.split(key, 32))

    def w(shape, dtype=jnp.bfloat16):
        return (std * jax.random.normal(next(keys), shape)).astype(dtype)

    def zeros(shape):
        return jnp.zeros(shape, jnp.float32)

    def ones(shape):
        return jnp.ones(shape, jnp.float32)

    L = N_LAYERS
    cls_w = w((HIDDEN, NUM_LABELS))
    return {
        # embedding tables stay f32 (gather + sum done in JAX glue)
        "word_emb": w((VOCAB, HIDDEN), jnp.float32),
        "pos_emb": w((MAX_POS, HIDDEN), jnp.float32),
        "type_emb": w((TYPE_VOCAB, HIDDEN), jnp.float32),
        "emb_ln_g": ones((1, HIDDEN)),
        "emb_ln_b": zeros((1, HIDDEN)),
        # per-layer stacks; weight matrices bf16 (MXU-native), biases/LN params f32
        "wqkv": w((L, HIDDEN, 3 * HIDDEN)),
        "bqkv": zeros((L, 1, 3 * HIDDEN)),
        "wo": w((L, HIDDEN, HIDDEN)),
        "bo": zeros((L, 1, HIDDEN)),
        "ln1_g": ones((L, 1, HIDDEN)),
        "ln1_b": zeros((L, 1, HIDDEN)),
        "w1": w((L, HIDDEN, INTERMEDIATE)),
        "b1": zeros((L, 1, INTERMEDIATE)),
        "w2": w((L, INTERMEDIATE, HIDDEN)),
        "b2": zeros((L, 1, HIDDEN)),
        "ln2_g": ones((L, 1, HIDDEN)),
        "ln2_b": zeros((L, 1, HIDDEN)),
        "pooler_w": w((HIDDEN, HIDDEN)),
        "pooler_b": zeros((1, HIDDEN)),
        # classifier padded to 128 lanes for a lane-dense output store
        "cls_w_pad": jnp.pad(cls_w, ((0, 0), (0, CLS_PAD - NUM_LABELS))),
        "cls_b_pad": zeros((1, CLS_PAD)),
    }


# ------------------------------- forward pass -------------------------------
def sentence_classifier_forward(params, input_ids, attention_mask):
    B, S = input_ids.shape

    # embeddings: gather + sum stays in JAX glue (row gather has no clean BlockSpec form);
    # token_type_ids are assumed all-zero (HF default).
    positions = jnp.arange(S)
    emb = (jnp.take(params["word_emb"], input_ids, axis=0)
           + params["pos_emb"][positions][None, :, :]
           + params["type_emb"][0][None, None, :]).astype(jnp.float32)      # (B, S, H)
    emb2d = emb.reshape(B * S, HIDDEN)                                      # flatten rows

    # extended attention mask: (1 - mask) * -10000, kept in f32
    mask_bias = ((1.0 - attention_mask.astype(jnp.float32)) * -10000.0)[:, None, :]  # (B,1,S)

    logits_pad = _fused_bert(params, emb2d, mask_bias, B, S)                # (B, CLS_PAD)
    return logits_pad[:, :NUM_LABELS]                                       # (B, num_labels)


# ----------------------------------- main -----------------------------------
if __name__ == "__main__":
    key = jax.random.PRNGKey(0)
    k_param, k_ids = jax.random.split(key)

    params = init_params(k_param)
    input_ids = jax.random.randint(k_ids, (BATCH, SEQ), 0, VOCAB, dtype=jnp.int32)
    attention_mask = jnp.ones((BATCH, SEQ), dtype=jnp.int32)

    logits = jax.jit(sentence_classifier_forward)(params, input_ids, attention_mask)
    logits = jax.block_until_ready(logits)

    assert logits.shape == (BATCH, NUM_LABELS)
    assert bool(jnp.all(jnp.isfinite(logits)))
    print("KERNEL_OK")
</pallas_src>

<mosaic_0001>
module attributes {stable_mosaic.version = 11 : i64} {
  func.func @_bert_kernel(%arg0: i32, %arg1: memref<16x32xf32, #tpu.memory_space<vmem>>, %arg2: memref<2x1x8xf32, #tpu.memory_space<vmem>>, %arg3: memref<1x32xf32, #tpu.memory_space<vmem>>, %arg4: memref<1x32xf32, #tpu.memory_space<vmem>>, %arg5: memref<1x32x96xbf16, #tpu.memory_space<vmem>>, %arg6: memref<1x1x96xf32, #tpu.memory_space<vmem>>, %arg7: memref<1x32x32xbf16, #tpu.memory_space<vmem>>, %arg8: memref<1x1x32xf32, #tpu.memory_space<vmem>>, %arg9: memref<1x1x32xf32, #tpu.memory_space<vmem>>, %arg10: memref<1x1x32xf32, #tpu.memory_space<vmem>>, %arg11: memref<1x32x128xbf16, #tpu.memory_space<vmem>>, %arg12: memref<1x1x128xf32, #tpu.memory_space<vmem>>, %arg13: memref<1x128x32xbf16, #tpu.memory_space<vmem>>, %arg14: memref<1x1x32xf32, #tpu.memory_space<vmem>>, %arg15: memref<1x1x32xf32, #tpu.memory_space<vmem>>, %arg16: memref<1x1x32xf32, #tpu.memory_space<vmem>>, %arg17: memref<32x32xbf16, #tpu.memory_space<vmem>>, %arg18: memref<1x32xf32, #tpu.memory_space<vmem>>, %arg19: memref<32x128xbf16, #tpu.memory_space<vmem>>, %arg20: memref<1x128xf32, #tpu.memory_space<vmem>>, %arg21: memref<2x128xf32, #tpu.memory_space<vmem>>, %arg22: memref<16x32xf32, #tpu.memory_space<vmem>>) attributes {dimension_semantics = [#tpu.dimension_semantics<arbitrary>], iteration_bounds = array<i64: 2>, scalar_prefetch = 0 : i64, scratch_operands = 1 : i64, tpu.core_type = #tpu.core_type<tc>, window_params = [{pipeline_mode = #tpu.pipeline_mode<synchronous>, transform_indices = @transform_0, window_bounds = array<i64: 16, 32>}, {pipeline_mode = #tpu.pipeline_mode<synchronous>, transform_indices = @transform_1, window_bounds = array<i64: 2, 1, 8>}, {pipeline_mode = #tpu.pipeline_mode<synchronous>, transform_indices = @transform_2, window_bounds = array<i64: 1, 32>}, {pipeline_mode = #tpu.pipeline_mode<synchronous>, transform_indices = @transform_3, window_bounds = array<i64: 1, 32>}, {transform_indices = @transform_4, window_bounds = array<i64: 1, 32, 96>}, {transform_indices = @transform_5, window_bounds = array<i64: 1, 1, 96>}, {transform_indices = @transform_6, window_bounds = array<i64: 1, 32, 32>}, {transform_indices = @transform_7, window_bounds = array<i64: 1, 1, 32>}, {transform_indices = @transform_8, window_bounds = array<i64: 1, 1, 32>}, {transform_indices = @transform_9, window_bounds = array<i64: 1, 1, 32>}, {transform_indices = @transform_10, window_bounds = array<i64: 1, 32, 128>}, {transform_indices = @transform_11, window_bounds = array<i64: 1, 1, 128>}, {transform_indices = @transform_12, window_bounds = array<i64: 1, 128, 32>}, {transform_indices = @transform_13, window_bounds = array<i64: 1, 1, 32>}, {transform_indices = @transform_14, window_bounds = array<i64: 1, 1, 32>}, {transform_indices = @transform_15, window_bounds = array<i64: 1, 1, 32>}, {pipeline_mode = #tpu.pipeline_mode<synchronous>, transform_indices = @transform_16, window_bounds = array<i64: 32, 32>}, {pipeline_mode = #tpu.pipeline_mode<synchronous>, transform_indices = @transform_17, window_bounds = array<i64: 1, 32>}, {pipeline_mode = #tpu.pipeline_mode<synchronous>, transform_indices = @transform_18, window_bounds = array<i64: 32, 128>}, {pipeline_mode = #tpu.pipeline_mode<synchronous>, transform_indices = @transform_19, window_bounds = array<i64: 1, 128>}, {pipeline_mode = #tpu.pipeline_mode<synchronous>, transform_indices = @transform_20, window_bounds = array<i64: 2, 128>}]} {
    %c0_i32 = arith.constant 0 : i32
    %0 = arith.cmpi eq, %arg0, %c0_i32 : i32
    %1 = arith.extui %0 : i1 to i32
    %c0_i32_0 = arith.constant 0 : i32
    %2 = arith.cmpi ne, %1, %c0_i32_0 : i32
    scf.if %2 {
      %c0_71 = arith.constant 0 : index
      %c0_72 = arith.constant 0 : index
      %157 = vector.load %arg1[%c0_71, %c0_72] : memref<16x32xf32, #tpu.memory_space<vmem>>, vector<16x32xf32>
      %c0_73 = arith.constant 0 : index
      %c0_74 = arith.constant 0 : index
      %158 = vector.load %arg3[%c0_73, %c0_74] : memref<1x32xf32, #tpu.memory_space<vmem>>, vector<1x32xf32>
      %c0_75 = arith.constant 0 : index
      %c0_76 = arith.constant 0 : index
      %159 = vector.load %arg4[%c0_75, %c0_76] : memref<1x32xf32, #tpu.memory_space<vmem>>, vector<1x32xf32>
      %cst_77 = arith.constant dense<0.000000e+00> : vector<16xf32>
      %160 = vector.multi_reduction <add>, %157, %cst_77 [1] : vector<16x32xf32> to vector<16xf32>
      %161 = vector.shape_cast %160 : vector<16xf32> to vector<16x1xf32>
      %cst_78 = arith.constant 3.200000e+01 : f32
      %162 = vector.broadcast %cst_78 : f32 to vector<16x1xf32>
      %163 = arith.divf %161, %162 : vector<16x1xf32>
      %164 = vector.broadcast %163 : vector<16x1xf32> to vector<16x32xf32>
      %165 = arith.subf %157, %164 : vector<16x32xf32>
      %166 = arith.mulf %165, %165 : vector<16x32xf32>
      %cst_79 = arith.constant dense<0.000000e+00> : vector<16xf32>
      %167 = vector.multi_reduction <add>, %166, %cst_79 [1] : vector<16x32xf32> to vector<16xf32>
      %168 = vector.shape_cast %167 : vector<16xf32> to vector<16x1xf32>
      %cst_80 = arith.constant 3.200000e+01 : f32
      %169 = vector.broadcast %cst_80 : f32 to vector<16x1xf32>
      %170 = arith.divf %168, %169 : vector<16x1xf32>
      %171 = vector.broadcast %163 : vector<16x1xf32> to vector<16x32xf32>
      %172 = arith.subf %157, %171 : vector<16x32xf32>
      %cst_81 = arith.constant 9.99999996E-13 : f32
      %173 = vector.broadcast %cst_81 : f32 to vector<16x1xf32>
      %174 = arith.addf %170, %173 : vector<16x1xf32>
      %175 = math.rsqrt %174 : vector<16x1xf32>
      %176 = vector.broadcast %175 : vector<16x1xf32> to vector<16x32xf32>
      %177 = arith.mulf %172, %176 : vector<16x32xf32>
      %178 = vector.broadcast %158 : vector<1x32xf32> to vector<16x32xf32>
      %179 = arith.mulf %177, %178 : vector<16x32xf32>
      %180 = vector.broadcast %159 : vector<1x32xf32> to vector<16x32xf32>
      %181 = arith.addf %179, %180 : vector<16x32xf32>
      %c0_82 = arith.constant 0 : index
      %c0_83 = arith.constant 0 : index
      %182 = vector.load %arg22[%c0_82, %c0_83] : memref<16x32xf32, #tpu.memory_space<vmem>>, vector<16x32xf32>
      tpu.vector_store %arg22[%c0_82, %c0_83], %181 {strides = array<i32>} : memref<16x32xf32, #tpu.memory_space<vmem>>, vector<16x32xf32>,
    } else {
    }
    %c0 = arith.constant 0 : index
    %c0_1 = arith.constant 0 : index
    %3 = vector.load %arg22[%c0, %c0_1] : memref<16x32xf32, #tpu.memory_space<vmem>>, vector<16x32xf32>
    %4 = arith.truncf %3 : vector<16x32xf32> to vector<16x32xbf16>
    %c0_2 = arith.constant 0 : index
    %c0_3 = arith.constant 0 : index
    %c0_4 = arith.constant 0 : index
    %5 = vector.load %arg5[%c0_2, %c0_3, %c0_4] : memref<1x32x96xbf16, #tpu.memory_space<vmem>>, vector<1x32x96xbf16>
    %6 = vector.shape_cast %5 : vector<1x32x96xbf16> to vector<32x96xbf16>
    %cst = arith.constant dense<0.000000e+00> : vector<16x96xf32>
    %7 = tpu.matmul %4, %6, %cst {dimension_numbers = #tpu.dot_dimension_numbers<[1], [0], [0], [1], [0, 0, 1, 1], [], []>} : vector<16x32xbf16>, vector<32x96xbf16>, vector<16x96xf32> -> vector<16x96xf32>
    %c0_5 = arith.constant 0 : index
    %c0_6 = arith.constant 0 : index
    %c0_7 = arith.constant 0 : index
    %8 = vector.load %arg6[%c0_5, %c0_6, %c0_7] : memref<1x1x96xf32, #tpu.memory_space<vmem>>, vector<1x1x96xf32>
    %9 = vector.shape_cast %8 : vector<1x1x96xf32> to vector<1x96xf32>
    %10 = vector.broadcast %9 : vector<1x96xf32> to vector<16x96xf32>
    %11 = arith.addf %7, %10 : vector<16x96xf32>
    %12 = vector.shape_cast %11 : vector<16x96xf32> to vector<2x8x96xf32>
    %c0_8 = arith.constant 0 : index
    %c0_9 = arith.constant 0 : index
    %c0_10 = arith.constant 0 : index
    %13 = vector.load %arg2[%c0_8, %c0_9, %c0_10] : memref<2x1x8xf32, #tpu.memory_space<vmem>>, vector<2x1x8xf32>
    %14 = vector.shape_cast %13 : vector<2x1x8xf32> to vector<2x1x8xf32>
    %15 = vector.broadcast %14 : vector<2x1x8xf32> to vector<2x8x8xf32>
    %16 = vector.extract_strided_slice %12 {offsets = [0, 0, 0], sizes = [2, 8, 16], strides = [1, 1, 1]} : vector<2x8x96xf32> to vector<2x8x16xf32>
    %17 = vector.extract_strided_slice %12 {offsets = [0, 0, 32], sizes = [2, 8, 16], strides = [1, 1, 1]} : vector<2x8x96xf32> to vector<2x8x16xf32>
    %18 = vector.extract_strided_slice %12 {offsets = [0, 0, 64], sizes = [2, 8, 16], strides = [1, 1, 1]} : vector<2x8x96xf32> to vector<2x8x16xf32>
    %19 = arith.truncf %16 : vector<2x8x16xf32> to vector<2x8x16xbf16>
    %20 = arith.truncf %17 : vector<2x8x16xf32> to vector<2x8x16xbf16>
    "tpu.trace_start"() <{level = 10 : i32, message = "bqd,bkd->bqk"}> : () -> ()
    %cst_11 = arith.constant dense<0.000000e+00> : vector<2x8x8xf32>
    %21 = tpu.matmul %19, %20, %cst_11 {dimension_numbers = #tpu.dot_dimension_numbers<[2], [2], [1], [1], [0, 0, 0, 1, 1, 1], [0], [0]>} : vector<2x8x16xbf16>, vector<2x8x16xbf16>, vector<2x8x8xf32> -> vector<2x8x8xf32>
    "tpu.trace_stop"() : () -> ()
    %cst_12 = arith.constant 2.500000e-01 : f32
    %22 = vector.broadcast %cst_12 : f32 to vector<2x8x8xf32>
    %23 = arith.mulf %21, %22 : vector<2x8x8xf32>
    %24 = arith.addf %23, %15 : vector<2x8x8xf32>
    %cst_13 = arith.constant dense<0xFF800000> : vector<2x8xf32>
    %25 = vector.multi_reduction <maximumf>, %24, %cst_13 [2] : vector<2x8x8xf32> to vector<2x8xf32>
    %26 = vector.shape_cast %25 : vector<2x8xf32> to vector<2x8x1xf32>
    %27 = vector.broadcast %26 : vector<2x8x1xf32> to vector<2x8x8xf32>
    %28 = arith.subf %24, %27 : vector<2x8x8xf32>
    %29 = math.exp %28 : vector<2x8x8xf32>
    %cst_14 = arith.constant dense<0.000000e+00> : vector<2x8xf32>
    %30 = vector.multi_reduction <add>, %29, %cst_14 [2] : vector<2x8x8xf32> to vector<2x8xf32>
    %31 = vector.shape_cast %30 : vector<2x8xf32> to vector<2x8x1xf32>
    %32 = tpu.reciprocal %31 {approx = true} : vector<2x8x1xf32> -> vector<2x8x1xf32>
    %33 = vector.broadcast %32 : vector<2x8x1xf32> to vector<2x8x8xf32>
    %34 = arith.mulf %29, %33 : vector<2x8x8xf32>
    %35 = arith.truncf %34 : vector<2x8x8xf32> to vector<2x8x8xbf16>
    %36 = arith.truncf %18 : vector<2x8x16xf32> to vector<2x8x16xbf16>
    "tpu.trace_start"() <{level = 10 : i32, message = "bqk,bkd->bqd"}> : () -> ()
    %cst_15 = arith.constant dense<0.000000e+00> : vector<2x8x16xf32>
    %37 = tpu.matmul %35, %36, %cst_15 {dimension_numbers = #tpu.dot_dimension_numbers<[2], [1], [1], [2], [0, 0, 0, 1, 1, 2], [0], [0]>} : vector<2x8x8xbf16>, vector<2x8x16xbf16>, vector<2x8x16xf32> -> vector<2x8x16xf32>
    "tpu.trace_stop"() : () -> ()
    %38 = vector.extract_strided_slice %12 {offsets = [0, 0, 16], sizes = [2, 8, 16], strides = [1, 1, 1]} : vector<2x8x96xf32> to vector<2x8x16xf32>
    %39 = vector.extract_strided_slice %12 {offsets = [0, 0, 48], sizes = [2, 8, 16], strides = [1, 1, 1]} : vector<2x8x96xf32> to vector<2x8x16xf32>
    %40 = vector.extract_strided_slice %12 {offsets = [0, 0, 80], sizes = [2, 8, 16], strides = [1, 1, 1]} : vector<2x8x96xf32> to vector<2x8x16xf32>
    %41 = arith.truncf %38 : vector<2x8x16xf32> to vector<2x8x16xbf16>
    %42 = arith.truncf %39 : vector<2x8x16xf32> to vector<2x8x16xbf16>
    "tpu.trace_start"() <{level = 10 : i32, message = "bqd,bkd->bqk"}> : () -> ()
    %cst_16 = arith.constant dense<0.000000e+00> : vector<2x8x8xf32>
    %43 = tpu.matmul %41, %42, %cst_16 {dimension_numbers = #tpu.dot_dimension_numbers<[2], [2], [1], [1], [0, 0, 0, 1, 1, 1], [0], [0]>} : vector<2x8x16xbf16>, vector<2x8x16xbf16>, vector<2x8x8xf32> -> vector<2x8x8xf32>
    "tpu.trace_stop"() : () -> ()
    %cst_17 = arith.constant 2.500000e-01 : f32
    %44 = vector.broadcast %cst_17 : f32 to vector<2x8x8xf32>
    %45 = arith.mulf %43, %44 : vector<2x8x8xf32>
    %46 = arith.addf %45, %15 : vector<2x8x8xf32>
    %cst_18 = arith.constant dense<0xFF800000> : vector<2x8xf32>
    %47 = vector.multi_reduction <maximumf>, %46, %cst_18 [2] : vector<2x8x8xf32> to vector<2x8xf32>
    %48 = vector.shape_cast %47 : vector<2x8xf32> to vector<2x8x1xf32>
    %49 = vector.broadcast %48 : vector<2x8x1xf32> to vector<2x8x8xf32>
    %50 = arith.subf %46, %49 : vector<2x8x8xf32>
    %51 = math.exp %50 : vector<2x8x8xf32>
    %cst_19 = arith.constant dense<0.000000e+00> : vector<2x8xf32>
    %52 = vector.multi_reduction <add>, %51, %cst_19 [2] : vector<2x8x8xf32> to vector<2x8xf32>
    %53 = vector.shape_cast %52 : vector<2x8xf32> to vector<2x8x1xf32>
    %54 = tpu.reciprocal %53 {approx = true} : vector<2x8x1xf32> -> vector<2x8x1xf32>
    %55 = vector.broadcast %54 : vector<2x8x1xf32> to vector<2x8x8xf32>
    %56 = arith.mulf %51, %55 : vector<2x8x8xf32>
    %57 = arith.truncf %56 : vector<2x8x8xf32> to vector<2x8x8xbf16>
    %58 = arith.truncf %40 : vector<2x8x16xf32> to vector<2x8x16xbf16>
    "tpu.trace_start"() <{level = 10 : i32, message = "bqk,bkd->bqd"}> : () -> ()
    %cst_20 = arith.constant dense<0.000000e+00> : vector<2x8x16xf32>
    %59 = tpu.matmul %57, %58, %cst_20 {dimension_numbers = #tpu.dot_dimension_numbers<[2], [1], [1], [2], [0, 0, 0, 1, 1, 2], [0], [0]>} : vector<2x8x8xbf16>, vector<2x8x16xbf16>, vector<2x8x16xf32> -> vector<2x8x16xf32>
    "tpu.trace_stop"() : () -> ()
    %60 = tpu.concatenate %37, %59 in 2 : vector<2x8x16xf32>, vector<2x8x16xf32> -> vector<2x8x32xf32>
    %61 = vector.shape_cast %60 : vector<2x8x32xf32> to vector<16x32xf32>
    %62 = arith.truncf %61 : vector<16x32xf32> to vector<16x32xbf16>
    %c0_21 = arith.constant 0 : index
    %c0_22 = arith.constant 0 : index
    %c0_23 = arith.constant 0 : index
    %63 = vector.load %arg7[%c0_21, %c0_22, %c0_23] : memref<1x32x32xbf16, #tpu.memory_space<vmem>>, vector<1x32x32xbf16>
    %64 = vector.shape_cast %63 : vector<1x32x32xbf16> to vector<32x32xbf16>
    %cst_24 = arith.constant dense<0.000000e+00> : vector<16x32xf32>
    %65 = tpu.matmul %62, %64, %cst_24 {dimension_numbers = #tpu.dot_dimension_numbers<[1], [0], [0], [1], [0, 0, 1, 1], [], []>} : vector<16x32xbf16>, vector<32x32xbf16>, vector<16x32xf32> -> vector<16x32xf32>
    %c0_25 = arith.constant 0 : index
    %c0_26 = arith.constant 0 : index
    %c0_27 = arith.constant 0 : index
    %66 = vector.load %arg8[%c0_25, %c0_26, %c0_27] : memref<1x1x32xf32, #tpu.memory_space<vmem>>, vector<1x1x32xf32>
    %67 = vector.shape_cast %66 : vector<1x1x32xf32> to vector<1x32xf32>
    %68 = vector.broadcast %67 : vector<1x32xf32> to vector<16x32xf32>
    %69 = arith.addf %65, %68 : vector<16x32xf32>
    %70 = arith.addf %69, %3 : vector<16x32xf32>
    %c0_28 = arith.constant 0 : index
    %c0_29 = arith.constant 0 : index
    %c0_30 = arith.constant 0 : index
    %71 = vector.load %arg9[%c0_28, %c0_29, %c0_30] : memref<1x1x32xf32, #tpu.memory_space<vmem>>, vector<1x1x32xf32>
    %72 = vector.shape_cast %71 : vector<1x1x32xf32> to vector<1x32xf32>
    %c0_31 = arith.constant 0 : index
    %c0_32 = arith.constant 0 : index
    %c0_33 = arith.constant 0 : index
    %73 = vector.load %arg10[%c0_31, %c0_32, %c0_33] : memref<1x1x32xf32, #tpu.memory_space<vmem>>, vector<1x1x32xf32>
    %74 = vector.shape_cast %73 : vector<1x1x32xf32> to vector<1x32xf32>
    %cst_34 = arith.constant dense<0.000000e+00> : vector<16xf32>
    %75 = vector.multi_reduction <add>, %70, %cst_34 [1] : vector<16x32xf32> to vector<16xf32>
    %76 = vector.shape_cast %75 : vector<16xf32> to vector<16x1xf32>
    %cst_35 = arith.constant 3.200000e+01 : f32
    %77 = vector.broadcast %cst_35 : f32 to vector<16x1xf32>
    %78 = arith.divf %76, %77 : vector<16x1xf32>
    %79 = vector.broadcast %78 : vector<16x1xf32> to vector<16x32xf32>
    %80 = arith.subf %70, %79 : vector<16x32xf32>
    %81 = arith.mulf %80, %80 : vector<16x32xf32>
    %cst_36 = arith.constant dense<0.000000e+00> : vector<16xf32>
    %82 = vector.multi_reduction <add>, %81, %cst_36 [1] : vector<16x32xf32> to vector<16xf32>
    %83 = vector.shape_cast %82 : vector<16xf32> to vector<16x1xf32>
    %cst_37 = arith.constant 3.200000e+01 : f32
    %84 = vector.broadcast %cst_37 : f32 to vector<16x1xf32>
    %85 = arith.divf %83, %84 : vector<16x1xf32>
    %86 = vector.broadcast %78 : vector<16x1xf32> to vector<16x32xf32>
    %87 = arith.subf %70, %86 : vector<16x32xf32>
    %cst_38 = arith.constant 9.99999996E-13 : f32
    %88 = vector.broadcast %cst_38 : f32 to vector<16x1xf32>
    %89 = arith.addf %85, %88 : vector<16x1xf32>
    %90 = math.rsqrt %89 : vector<16x1xf32>
    %91 = vector.broadcast %90 : vector<16x1xf32> to vector<16x32xf32>
    %92 = arith.mulf %87, %91 : vector<16x32xf32>
    %93 = vector.broadcast %72 : vector<1x32xf32> to vector<16x32xf32>
    %94 = arith.mulf %92, %93 : vector<16x32xf32>
    %95 = vector.broadcast %74 : vector<1x32xf32> to vector<16x32xf32>
    %96 = arith.addf %94, %95 : vector<16x32xf32>
    %97 = arith.truncf %96 : vector<16x32xf32> to vector<16x32xbf16>
    %c0_39 = arith.constant 0 : index
    %c0_40 = arith.constant 0 : index
    %c0_41 = arith.constant 0 : index
    %98 = vector.load %arg11[%c0_39, %c0_40, %c0_41] : memref<1x32x128xbf16, #tpu.memory_space<vmem>>, vector<1x32x128xbf16>
    %99 = vector.shape_cast %98 : vector<1x32x128xbf16> to vector<32x128xbf16>
    %cst_42 = arith.constant dense<0.000000e+00> : vector<16x128xf32>
    %100 = tpu.matmul %97, %99, %cst_42 {dimension_numbers = #tpu.dot_dimension_numbers<[1], [0], [0], [1], [0, 0, 1, 1], [], []>} : vector<16x32xbf16>, vector<32x128xbf16>, vector<16x128xf32> -> vector<16x128xf32>
    %c0_43 = arith.constant 0 : index
    %c0_44 = arith.constant 0 : index
    %c0_45 = arith.constant 0 : index
    %101 = vector.load %arg12[%c0_43, %c0_44, %c0_45] : memref<1x1x128xf32, #tpu.memory_space<vmem>>, vector<1x1x128xf32>
    %102 = vector.shape_cast %101 : vector<1x1x128xf32> to vector<1x128xf32>
    %103 = vector.broadcast %102 : vector<1x128xf32> to vector<16x128xf32>
    %104 = arith.addf %100, %103 : vector<16x128xf32>
    %105 = arith.mulf %104, %104 : vector<16x128xf32>
    %106 = arith.mulf %104, %105 : vector<16x128xf32>
    %cst_46 = arith.constant 4.471500e-02 : f32
    %107 = vector.broadcast %cst_46 : f32 to vector<16x128xf32>
    %108 = arith.mulf %107, %106 : vector<16x128xf32>
    %109 = arith.addf %104, %108 : vector<16x128xf32>
    %cst_47 = arith.constant 0.797884583 : f32
    %110 = vector.broadcast %cst_47 : f32 to vector<16x128xf32>
    %111 = arith.mulf %110, %109 : vector<16x128xf32>
    %112 = math.tanh %111 : vector<16x128xf32>
    %cst_48 = arith.constant 1.000000e+00 : f32
    %113 = vector.broadcast %cst_48 : f32 to vector<16x128xf32>
    %114 = arith.addf %113, %112 : vector<16x128xf32>
    %cst_49 = arith.constant 5.000000e-01 : f32
    %115 = vector.broadcast %cst_49 : f32 to vector<16x128xf32>
    %116 = arith.mulf %115, %114 : vector<16x128xf32>
    %117 = arith.mulf %104, %116 : vector<16x128xf32>
    %118 = arith.truncf %117 : vector<16x128xf32> to vector<16x128xbf16>
    %c0_50 = arith.constant 0 : index
    %c0_51 = arith.constant 0 : index
    %c0_52 = arith.constant 0 : index
    %119 = vector.load %arg13[%c0_50, %c0_51, %c0_52] : memref<1x128x32xbf16, #tpu.memory_space<vmem>>, vector<1x128x32xbf16>
    %120 = vector.shape_cast %119 : vector<1x128x32xbf16> to vector<128x32xbf16>
    %cst_53 = arith.constant dense<0.000000e+00> : vector<16x32xf32>
    %121 = tpu.matmul %118, %120, %cst_53 {dimension_numbers = #tpu.dot_dimension_numbers<[1], [0], [0], [1], [0, 0, 1, 1], [], []>} : vector<16x128xbf16>, vector<128x32xbf16>, vector<16x32xf32> -> vector<16x32xf32>
    %c0_54 = arith.constant 0 : index
    %c0_55 = arith.constant 0 : index
    %c0_56 = arith.constant 0 : index
    %122 = vector.load %arg14[%c0_54, %c0_55, %c0_56] : memref<1x1x32xf32, #tpu.memory_space<vmem>>, vector<1x1x32xf32>
    %123 = vector.shape_cast %122 : vector<1x1x32xf32> to vector<1x32xf32>
    %124 = vector.broadcast %123 : vector<1x32xf32> to vector<16x32xf32>
    %125 = arith.addf %121, %124 : vector<16x32xf32>
    %126 = arith.addf %125, %96 : vector<16x32xf32>
    %c0_57 = arith.constant 0 : index
    %c0_58 = arith.constant 0 : index
    %c0_59 = arith.constant 0 : index
    %127 = vector.load %arg15[%c0_57, %c0_58, %c0_59] : memref<1x1x32xf32, #tpu.memory_space<vmem>>, vector<1x1x32xf32>
    %128 = vector.shape_cast %127 : vector<1x1x32xf32> to vector<1x32xf32>
    %c0_60 = arith.constant 0 : index
    %c0_61 = arith.constant 0 : index
    %c0_62 = arith.constant 0 : index
    %129 = vector.load %arg16[%c0_60, %c0_61, %c0_62] : memref<1x1x32xf32, #tpu.memory_space<vmem>>, vector<1x1x32xf32>
    %130 = vector.shape_cast %129 : vector<1x1x32xf32> to vector<1x32xf32>
    %cst_63 = arith.constant dense<0.000000e+00> : vector<16xf32>
    %131 = vector.multi_reduction <add>, %126, %cst_63 [1] : vector<16x32xf32> to vector<16xf32>
    %132 = vector.shape_cast %131 : vector<16xf32> to vector<16x1xf32>
    %cst_64 = arith.constant 3.200000e+01 : f32
    %133 = vector.broadcast %cst_64 : f32 to vector<16x1xf32>
    %134 = arith.divf %132, %133 : vector<16x1xf32>
    %135 = vector.broadcast %134 : vector<16x1xf32> to vector<16x32xf32>
    %136 = arith.subf %126, %135 : vector<16x32xf32>
    %137 = arith.mulf %136, %136 : vector<16x32xf32>
    %cst_65 = arith.constant dense<0.000000e+00> : vector<16xf32>
    %138 = vector.multi_reduction <add>, %137, %cst_65 [1] : vector<16x32xf32> to vector<16xf32>
    %139 = vector.shape_cast %138 : vector<16xf32> to vector<16x1xf32>
    %cst_66 = arith.constant 3.200000e+01 : f32
    %140 = vector.broadcast %cst_66 : f32 to vector<16x1xf32>
    %141 = arith.divf %139, %140 : vector<16x1xf32>
    %142 = vector.broadcast %134 : vector<16x1xf32> to vector<16x32xf32>
    %143 = arith.subf %126, %142 : vector<16x32xf32>
    %cst_67 = arith.constant 9.99999996E-13 : f32
    %144 = vector.broadcast %cst_67 : f32 to vector<16x1xf32>
    %145 = arith.addf %141, %144 : vector<16x1xf32>
    %146 = math.rsqrt %145 : vector<16x1xf32>
    %147 = vector.broadcast %146 : vector<16x1xf32> to vector<16x32xf32>
    %148 = arith.mulf %143, %147 : vector<16x32xf32>
    %149 = vector.broadcast %128 : vector<1x32xf32> to vector<16x32xf32>
    %150 = arith.mulf %148, %149 : vector<16x32xf32>
    %151 = vector.broadcast %130 : vector<1x32xf32> to vector<16x32xf32>
    %152 = arith.addf %150, %151 : vector<16x32xf32>
    %c0_68 = arith.constant 0 : index
    %c0_69 = arith.constant 0 : index
    %153 = vector.load %arg22[%c0_68, %c0_69] : memref<16x32xf32, #tpu.memory_space<vmem>>, vector<16x32xf32>
    tpu.vector_store %arg22[%c0_68, %c0_69], %152 {strides = array<i32>} : memref<16x32xf32, #tpu.memory_space<vmem>>, vector<16x32xf32>,
    %c1_i32 = arith.constant 1 : i32
    %154 = arith.cmpi eq, %arg0, %c1_i32 : i32
    %155 = arith.extui %154 : i1 to i32
    %c0_i32_70 = arith.constant 0 : i32
    %156 = arith.cmpi ne, %155, %c0_i32_70 : i32
    scf.if %156 {
      %157 = vector.shape_cast %152 : vector<16x32xf32> to vector<2x8x32xf32>
      %158 = vector.extract_strided_slice %157 {offsets = [0, 0, 0], sizes = [2, 1, 32], strides = [1, 1, 1]} : vector<2x8x32xf32> to vector<2x1x32xf32>
      %159 = vector.shape_cast %158 : vector<2x1x32xf32> to vector<2x32xf32>
      %160 = arith.truncf %159 : vector<2x32xf32> to vector<2x32xbf16>
      %c0_71 = arith.constant 0 : index
      %c0_72 = arith.constant 0 : index
      %161 = vector.load %arg17[%c0_71, %c0_72] : memref<32x32xbf16, #tpu.memory_space<vmem>>, vector<32x32xbf16>
      %cst_73 = arith.constant dense<0.000000e+00> : vector<2x32xf32>
      %162 = tpu.matmul %160, %161, %cst_73 {dimension_numbers = #tpu.dot_dimension_numbers<[1], [0], [0], [1], [0, 0, 1, 1], [], []>} : vector<2x32xbf16>, vector<32x32xbf16>, vector<2x32xf32> -> vector<2x32xf32>
      %c0_74 = arith.constant 0 : index
      %c0_75 = arith.constant 0 : index
      %163 = vector.load %arg18[%c0_74, %c0_75] : memref<1x32xf32, #tpu.memory_space<vmem>>, vector<1x32xf32>
      %164 = vector.broadcast %163 : vector<1x32xf32> to vector<2x32xf32>
      %165 = arith.addf %162, %164 : vector<2x32xf32>
      %166 = math.tanh %165 : vector<2x32xf32>
      %167 = arith.truncf %166 : vector<2x32xf32> to vector<2x32xbf16>
      %c0_76 = arith.constant 0 : index
      %c0_77 = arith.constant 0 : index
      %168 = vector.load %arg19[%c0_76, %c0_77] : memref<32x128xbf16, #tpu.memory_space<vmem>>, vector<32x128xbf16>
      %cst_78 = arith.constant dense<0.000000e+00> : vector<2x128xf32>
      %169 = tpu.matmul %167, %168, %cst_78 {dimension_numbers = #tpu.dot_dimension_numbers<[1], [0], [0], [1], [0, 0, 1, 1], [], []>} : vector<2x32xbf16>, vector<32x128xbf16>, vector<2x128xf32> -> vector<2x128xf32>
      %c0_79 = arith.constant 0 : index
      %c0_80 = arith.constant 0 : index
      %170 = vector.load %arg20[%c0_79, %c0_80] : memref<1x128xf32, #tpu.memory_space<vmem>>, vector<1x128xf32>
      %171 = vector.broadcast %170 : vector<1x128xf32> to vector<2x128xf32>
      %172 = arith.addf %169, %171 : vector<2x128xf32>
      %c0_81 = arith.constant 0 : index
      %c0_82 = arith.constant 0 : index
      %173 = vector.load %arg21[%c0_81, %c0_82] : memref<2x128xf32, #tpu.memory_space<vmem>>, vector<2x128xf32>
      tpu.vector_store %arg21[%c0_81, %c0_82], %172 {strides = array<i32>} : memref<2x128xf32, #tpu.memory_space<vmem>>, vector<2x128xf32>,
    } else {
    }
    return
  }
  func.func @transform_0(%arg0: i32) -> (i32, i32) {
    %c0_i32 = arith.constant 0 : i32
    %c0_i32_0 = arith.constant 0 : i32
    %c0_i32_1 = arith.constant 0 : i32
    return %c0_i32, %c0_i32_0 : i32, i32
  }
  func.func @transform_1(%arg0: i32) -> (i32, i32, i32) {
    %c0_i32 = arith.constant 0 : i32
    %c0_i32_0 = arith.constant 0 : i32
    %c0_i32_1 = arith.constant 0 : i32
    %c0_i32_2 = arith.constant 0 : i32
    return %c0_i32, %c0_i32_0, %c0_i32_1 : i32, i32, i32
  }
  func.func @transform_2(%arg0: i32) -> (i32, i32) {
    %c0_i32 = arith.constant 0 : i32
    %c0_i32_0 = arith.constant 0 : i32
    %c0_i32_1 = arith.constant 0 : i32
    return %c0_i32, %c0_i32_0 : i32, i32
  }
  func.func @transform_3(%arg0: i32) -> (i32, i32) {
    %c0_i32 = arith.constant 0 : i32
    %c0_i32_0 = arith.constant 0 : i32
    %c0_i32_1 = arith.constant 0 : i32
    return %c0_i32, %c0_i32_0 : i32, i32
  }
  func.func @transform_4(%arg0: i32) -> (i32, i32, i32) {
    %c0_i32 = arith.constant 0 : i32
    %c0_i32_0 = arith.constant 0 : i32
    %c0_i32_1 = arith.constant 0 : i32
    return %arg0, %c0_i32, %c0_i32_0 : i32, i32, i32
  }
  func.func @transform_5(%arg0: i32) -> (i32, i32, i32) {
    %c0_i32 = arith.constant 0 : i32
    %c0_i32_0 = arith.constant 0 : i32
    %c0_i32_1 = arith.constant 0 : i32
    return %arg0, %c0_i32, %c0_i32_0 : i32, i32, i32
  }
  func.func @transform_6(%arg0: i32) -> (i32, i32, i32) {
    %c0_i32 = arith.constant 0 : i32
    %c0_i32_0 = arith.constant 0 : i32
    %c0_i32_1 = arith.constant 0 : i32
    return %arg0, %c0_i32, %c0_i32_0 : i32, i32, i32
  }
  func.func @transform_7(%arg0: i32) -> (i32, i32, i32) {
    %c0_i32 = arith.constant 0 : i32
    %c0_i32_0 = arith.constant 0 : i32
    %c0_i32_1 = arith.constant 0 : i32
    return %arg0, %c0_i32, %c0_i32_0 : i32, i32, i32
  }
  func.func @transform_8(%arg0: i32) -> (i32, i32, i32) {
    %c0_i32 = arith.constant 0 : i32
    %c0_i32_0 = arith.constant 0 : i32
    %c0_i32_1 = arith.constant 0 : i32
    return %arg0, %c0_i32, %c0_i32_0 : i32, i32, i32
  }
  func.func @transform_9(%arg0: i32) -> (i32, i32, i32) {
    %c0_i32 = arith.constant 0 : i32
    %c0_i32_0 = arith.constant 0 : i32
    %c0_i32_1 = arith.constant 0 : i32
    return %arg0, %c0_i32, %c0_i32_0 : i32, i32, i32
  }
  func.func @transform_10(%arg0: i32) -> (i32, i32, i32) {
    %c0_i32 = arith.constant 0 : i32
    %c0_i32_0 = arith.constant 0 : i32
    %c0_i32_1 = arith.constant 0 : i32
    return %arg0, %c0_i32, %c0_i32_0 : i32, i32, i32
  }
  func.func @transform_11(%arg0: i32) -> (i32, i32, i32) {
    %c0_i32 = arith.constant 0 : i32
    %c0_i32_0 = arith.constant 0 : i32
    %c0_i32_1 = arith.constant 0 : i32
    return %arg0, %c0_i32, %c0_i32_0 : i32, i32, i32
  }
  func.func @transform_12(%arg0: i32) -> (i32, i32, i32) {
    %c0_i32 = arith.constant 0 : i32
    %c0_i32_0 = arith.constant 0 : i32
    %c0_i32_1 = arith.constant 0 : i32
    return %arg0, %c0_i32, %c0_i32_0 : i32, i32, i32
  }
  func.func @transform_13(%arg0: i32) -> (i32, i32, i32) {
    %c0_i32 = arith.constant 0 : i32
    %c0_i32_0 = arith.constant 0 : i32
    %c0_i32_1 = arith.constant 0 : i32
    return %arg0, %c0_i32, %c0_i32_0 : i32, i32, i32
  }
  func.func @transform_14(%arg0: i32) -> (i32, i32, i32) {
    %c0_i32 = arith.constant 0 : i32
    %c0_i32_0 = arith.constant 0 : i32
    %c0_i32_1 = arith.constant 0 : i32
    return %arg0, %c0_i32, %c0_i32_0 : i32, i32, i32
  }
  func.func @transform_15(%arg0: i32) -> (i32, i32, i32) {
    %c0_i32 = arith.constant 0 : i32
    %c0_i32_0 = arith.constant 0 : i32
    %c0_i32_1 = arith.constant 0 : i32
    return %arg0, %c0_i32, %c0_i32_0 : i32, i32, i32
  }
  func.func @transform_16(%arg0: i32) -> (i32, i32) {
    %c0_i32 = arith.constant 0 : i32
    %c0_i32_0 = arith.constant 0 : i32
    %c0_i32_1 = arith.constant 0 : i32
    return %c0_i32, %c0_i32_0 : i32, i32
  }
  func.func @transform_17(%arg0: i32) -> (i32, i32) {
    %c0_i32 = arith.constant 0 : i32
    %c0_i32_0 = arith.constant 0 : i32
    %c0_i32_1 = arith.constant 0 : i32
    return %c0_i32, %c0_i32_0 : i32, i32
  }
  func.func @transform_18(%arg0: i32) -> (i32, i32) {
    %c0_i32 = arith.constant 0 : i32
    %c0_i32_0 = arith.constant 0 : i32
    %c0_i32_1 = arith.constant 0 : i32
    return %c0_i32, %c0_i32_0 : i32, i32
  }
  func.func @transform_19(%arg0: i32) -> (i32, i32) {
    %c0_i32 = arith.constant 0 : i32
    %c0_i32_0 = arith.constant 0 : i32
    %c0_i32_1 = arith.constant 0 : i32
    return %c0_i32, %c0_i32_0 : i32, i32
  }
  func.func @transform_20(%arg0: i32) -> (i32, i32) {
    %c0_i32 = arith.constant 0 : i32
    %c0_i32_0 = arith.constant 0 : i32
    %c0_i32_1 = arith.constant 0 : i32
    return %c0_i32, %c0_i32_0 : i32, i32
  }
}

</mosaic_0001>

<llo_original>
// kernel: sentence_classifier_forward.1
$region0: #{sentence_classifier_forward.1}
  #allocation0 [shape = 'u32[]', space=smem, size = 0x4, offset = 0x4, fixed_abs, tag = 'smem constant byte address 0x4 - core index']
  #allocation1 [shape = 'u32[144,128]{1,0:T(1,128)}', space=vmem, size = 0x12000, scoped, tag = 'internal scratch']
  #allocation2 [shape = 'f32[16,32]{1,0:T(8,128)}', space=vmem, size = 0x2000, scoped, tag = 'scratch operand']
  %s0 = inlined_call_operand.vmem [shape: f32[16,32], index: 0, kind: input, shape index: {}]
  %s1 = inlined_call_operand.vmem [shape: f32[2,1,8], index: 1, kind: input, shape index: {}]
  %s2 = inlined_call_operand.vmem [shape: f32[1,32], index: 2, kind: input, shape index: {}]
  %s3 = inlined_call_operand.vmem [shape: f32[1,32], index: 3, kind: input, shape index: {}]
  %s4 = inlined_call_operand.vmem [shape: bf16[2,32,96], index: 4, kind: input, shape index: {}]
  %s5 = inlined_call_operand.vmem [shape: f32[2,1,96], index: 5, kind: input, shape index: {}]
  %s6 = inlined_call_operand.vmem [shape: bf16[2,32,32], index: 6, kind: input, shape index: {}]
  %s7 = inlined_call_operand.vmem [shape: f32[2,1,32], index: 7, kind: input, shape index: {}]
  %s8 = inlined_call_operand.vmem [shape: f32[2,1,32], index: 8, kind: input, shape index: {}]
  %s9 = inlined_call_operand.vmem [shape: f32[2,1,32], index: 9, kind: input, shape index: {}]
  %s10 = inlined_call_operand.vmem [shape: bf16[2,32,128], index: 10, kind: input, shape index: {}]
  %s11 = inlined_call_operand.vmem [shape: f32[2,1,128], index: 11, kind: input, shape index: {}]
  %s12 = inlined_call_operand.vmem [shape: bf16[2,128,32], index: 12, kind: input, shape index: {}]
  %s13 = inlined_call_operand.vmem [shape: f32[2,1,32], index: 13, kind: input, shape index: {}]
  %s14 = inlined_call_operand.vmem [shape: f32[2,1,32], index: 14, kind: input, shape index: {}]
  %s15 = inlined_call_operand.vmem [shape: f32[2,1,32], index: 15, kind: input, shape index: {}]
  %s16 = inlined_call_operand.vmem [shape: bf16[32,32], index: 16, kind: input, shape index: {}]
  %s17 = inlined_call_operand.vmem [shape: f32[1,32], index: 17, kind: input, shape index: {}]
  %s18 = inlined_call_operand.vmem [shape: bf16[32,128], index: 18, kind: input, shape index: {}]
  %s19 = inlined_call_operand.vmem [shape: f32[1,128], index: 19, kind: input, shape index: {}]
  %s20 = inlined_call_operand.hbm [shape: f32[2,128], index: 20, kind: output, shape index: {}]
  %s21 = sld [smem:[#allocation0]]
  $region121: #{sentence_classifier_forward.1} parent=0
    _
  %s23 = ssub.s32 1, %s21
  %s24 = scalar_select 0, %s23, %s21
  $region1: #{sentence_classifier_forward.1} parent=0
    #allocation3 [shape = 'u8[1024]{0}', space=vmem, size = 0x400, scoped, tag = 'output window, operand 0, single buffered']
    #allocation4 [shape = 's32[2]{0}', space=sflag, size = 0x8, scoped, tag = 'scoped memory for sentence_classifier_forward.1']
    %25 = vsyncpa [#allocation4], 0
    loop: start=0, step=1, limit=4
    $region2: #{sentence_classifier_forward.1} parent=1 // loop_pre_header
      _
    $region3: #{sentence_classifier_forward.1} parent=1 // loop_header
      %s27 = sphi 0, %s31
      %p28 = scmp.ge.s32.totalorder %s27, 4
      %s35 = sphi 0, %s35
      %s37 = sphi 0, %s35
      %s38 = sphi 0, %s37
      %s52 = sphi 0, %s38
      %s56 = sphi 0, %s56
      %s58 = sphi 0, %s56
      %s59 = sphi 0, %s58
      %s73 = sphi 0, %s59
      %s77 = sphi 0, %s77
      %s79 = sphi 0, %s77
      %s80 = sphi 0, %s79
      %s94 = sphi 0, %s80
      %s98 = sphi 0, %s98
      %s100 = sphi 0, %s98
      %s101 = sphi 0, %s100
      %s115 = sphi 0, %s101
      %s121 = sphi 0, %s123
      %s124 = sphi 0, %s121
      %s125 = sphi 0, %s124
      %s141 = sphi 0, %s125
      %s147 = sphi 0, %s149
      %s150 = sphi 0, %s147
      %s151 = sphi 0, %s150
      %s167 = sphi 0, %s151
      %s173 = sphi 0, %s175
      %s176 = sphi 0, %s173
      %s177 = sphi 0, %s176
      %s193 = sphi 0, %s177
      %s199 = sphi 0, %s201
      %s202 = sphi 0, %s199
      %s203 = sphi 0, %s202
      %s219 = sphi 0, %s203
      %s225 = sphi 0, %s227
      %s228 = sphi 0, %s225
      %s229 = sphi 0, %s228
      %s245 = sphi 0, %s229
      %s251 = sphi 0, %s253
      %s254 = sphi 0, %s251
      %s255 = sphi 0, %s254
      %s271 = sphi 0, %s255
      %s277 = sphi 0, %s279
      %s280 = sphi 0, %s277
      %s281 = sphi 0, %s280
      %s297 = sphi 0, %s281
      %s303 = sphi 0, %s305
      %s306 = sphi 0, %s303
      %s307 = sphi 0, %s306
      %s323 = sphi 0, %s307
      %s329 = sphi 0, %s331
      %s332 = sphi 0, %s329
      %s333 = sphi 0, %s332
      %s349 = sphi 0, %s333
      %s355 = sphi 0, %s357
      %s358 = sphi 0, %s355
      %s359 = sphi 0, %s358
      %s375 = sphi 0, %s359
      %s381 = sphi 0, %s383
      %s384 = sphi 0, %s381
      %s385 = sphi 0, %s384
      %s401 = sphi 0, %s385
      %s407 = sphi 0, %s409
      %s410 = sphi 0, %s407
      %s411 = sphi 0, %s410
      %s427 = sphi 0, %s411
      %s431 = sphi 0, %s431
      %s433 = sphi 0, %s431
      %s434 = sphi 0, %s433
      %s448 = sphi 0, %s434
      %s452 = sphi 0, %s452
      %s454 = sphi 0, %s452
      %s455 = sphi 0, %s454
      %s469 = sphi 0, %s455
      %s473 = sphi 0, %s473
      %s475 = sphi 0, %s473
      %s476 = sphi 0, %s475
      %s490 = sphi 0, %s476
      %s494 = sphi 0, %s494
      %s496 = sphi 0, %s494
      %s497 = sphi 0, %s496
      %s511 = sphi 0, %s497
      %s515 = sphi 0, %s515
      %s517 = sphi 0, %s515
      %s518 = sphi 0, %s517
      %s532 = sphi 0, %s518
    $region4: #{sentence_classifier_forward.1} parent=1 // loop_header_branch
      %30 = sbr.rel (%p28) target = $region8
    $region5: #{sentence_classifier_forward.1} parent=1 // loop_body
      %s32 = ssub.s32 %s27, 1
      %s33 = ssub.s32 %s27, 2
      %s34 = sadd.s32 %s27, 1
      %s36 = sadd.s32 %s35, 1
      %p39 = scmp.eq.s32.totalorder %s27, 1
      %p40 = scmp.ne.s32.totalorder %s35, %s37
      %p41 = scmp.eq.s32.totalorder %s27, 0
      %p42 = por %p40, %p41
      %p43 = scmp.ne.s32.totalorder %s35, %s37
      %p44 = scmp.eq.s32.totalorder %s32, 1
      %p45 = por %p43, %p44
      %p46 = scmp.ne.s32.totalorder %s37, %s38
      %p47 = scmp.eq.s32.totalorder %s32, 0
      %p48 = por %p46, %p47
      %p49 = scmp.ne.s32.totalorder %s37, %s38
      %p50 = scmp.eq.s32.totalorder %s33, 1
      %p51 = por %p49, %p50
      %p53 = scmp.ne.s32.totalorder %s38, %s52
      %p54 = scmp.eq.s32.totalorder %s33, 0
      %p55 = por %p53, %p54
      %s57 = sadd.s32 %s56, 1
      %p60 = scmp.eq.s32.totalorder %s27, 1
      %p61 = scmp.ne.s32.totalorder %s56, %s58
      %p62 = scmp.eq.s32.totalorder %s27, 0
      %p63 = por %p61, %p62
      %p64 = scmp.ne.s32.totalorder %s56, %s58
      %p65 = scmp.eq.s32.totalorder %s32, 1
      %p66 = por %p64, %p65
      %p67 = scmp.ne.s32.totalorder %s58, %s59
      %p68 = scmp.eq.s32.totalorder %s32, 0
      %p69 = por %p67, %p68
      %p70 = scmp.ne.s32.totalorder %s58, %s59
      %p71 = scmp.eq.s32.totalorder %s33, 1
      %p72 = por %p70, %p71
      %p74 = scmp.ne.s32.totalorder %s59, %s73
      %p75 = scmp.eq.s32.totalorder %s33, 0
      %p76 = por %p74, %p75
      %s78 = sadd.s32 %s77, 1
      %p81 = scmp.eq.s32.totalorder %s27, 1
      %p82 = scmp.ne.s32.totalorder %s77, %s79
      %p83 = scmp.eq.s32.totalorder %s27, 0
      %p84 = por %p82, %p83
      %p85 = scmp.ne.s32.totalorder %s77, %s79
      %p86 = scmp.eq.s32.totalorder %s32, 1
      %p87 = por %p85, %p86
      %p88 = scmp.ne.s32.totalorder %s79, %s80
      %p89 = scmp.eq.s32.totalorder %s32, 0
      %p90 = por %p88, %p89
      %p91 = scmp.ne.s32.totalorder %s79, %s80
      %p92 = scmp.eq.s32.totalorder %s33, 1
      %p93 = por %p91, %p92
      %p95 = scmp.ne.s32.totalorder %s80, %s94
      %p96 = scmp.eq.s32.totalorder %s33, 0
      %p97 = por %p95, %p96
      %s99 = sadd.s32 %s98, 1
      %p102 = scmp.eq.s32.totalorder %s27, 1
      %p103 = scmp.ne.s32.totalorder %s98, %s100
      %p104 = scmp.eq.s32.totalorder %s27, 0
      %p105 = por %p103, %p104
      %p106 = scmp.ne.s32.totalorder %s98, %s100
      %p107 = scmp.eq.s32.totalorder %s32, 1
      %p108 = por %p106, %p107
      %p109 = scmp.ne.s32.totalorder %s100, %s101
      %p110 = scmp.eq.s32.totalorder %s32, 0
      %p111 = por %p109, %p110
      %p112 = scmp.ne.s32.totalorder %s100, %s101
      %p113 = scmp.eq.s32.totalorder %s33, 1
      %p114 = por %p112, %p113
      %p116 = scmp.ne.s32.totalorder %s101, %s115
      %p117 = scmp.eq.s32.totalorder %s33, 0
      %p118 = por %p116, %p117
      %s119 = ssub.s32 %s27, %s34
      %p120 = scmp.eq.s32.totalorder %s119, 0
      %s122 = sadd.s32 %s121, 1
      %s123 = scalar_select %p120, %s121, %s122
      %p126 = pneg %p120
      %p127 = scmp.eq.s32.totalorder %s27, 1
      %p128 = por %p126, %p127
      %p129 = scmp.ne.s32.totalorder %s121, %s124
      %p130 = scmp.eq.s32.totalorder %s27, 0
      %p131 = por %p129, %p130
      %p132 = scmp.ne.s32.totalorder %s121, %s124
      %p133 = scmp.eq.s32.totalorder %s32, 1
      %p134 = por %p132, %p133
      %p135 = scmp.ne.s32.totalorder %s124, %s125
      %p136 = scmp.eq.s32.totalorder %s32, 0
      %p137 = por %p135, %p136
      %p138 = scmp.ne.s32.totalorder %s124, %s125
      %p139 = scmp.eq.s32.totalorder %s33, 1
      %p140 = por %p138, %p139
      %p142 = scmp.ne.s32.totalorder %s125, %s141
      %p143 = scmp.eq.s32.totalorder %s33, 0
      %p144 = por %p142, %p143
      %s145 = ssub.s32 %s27, %s34
      %p146 = scmp.eq.s32.totalorder %s145, 0
      %s148 = sadd.s32 %s147, 1
      %s149 = scalar_select %p146, %s147, %s148
      %p152 = pneg %p146
      %p153 = scmp.eq.s32.totalorder %s27, 1
      %p154 = por %p152, %p153
      %p155 = scmp.ne.s32.totalorder %s147, %s150
      %p156 = scmp.eq.s32.totalorder %s27, 0
      %p157 = por %p155, %p156
      %p158 = scmp.ne.s32.totalorder %s147, %s150
      %p159 = scmp.eq.s32.totalorder %s32, 1
      %p160 = por %p158, %p159
      %p161 = scmp.ne.s32.totalorder %s150, %s151
      %p162 = scmp.eq.s32.totalorder %s32, 0
      %p163 = por %p161, %p162
      %p164 = scmp.ne.s32.totalorder %s150, %s151
      %p165 = scmp.eq.s32.totalorder %s33, 1
      %p166 = por %p164, %p165
      %p168 = scmp.ne.s32.totalorder %s151, %s167
      %p169 = scmp.eq.s32.totalorder %s33, 0
      %p170 = por %p168, %p169
      %s171 = ssub.s32 %s27, %s34
      %p172 = scmp.eq.s32.totalorder %s171, 0
      %s174 = sadd.s32 %s173, 1
      %s175 = scalar_select %p172, %s173, %s174
      %p178 = pneg %p172
      %p179 = scmp.eq.s32.totalorder %s27, 1
      %p180 = por %p178, %p179
      %p181 = scmp.ne.s32.totalorder %s173, %s176
      %p182 = scmp.eq.s32.totalorder %s27, 0
      %p183 = por %p181, %p182
      %p184 = scmp.ne.s32.totalorder %s173, %s176
      %p185 = scmp.eq.s32.totalorder %s32, 1
      %p186 = por %p184, %p185
      %p187 = scmp.ne.s32.totalorder %s176, %s177
      %p188 = scmp.eq.s32.totalorder %s32, 0
      %p189 = por %p187, %p188
      %p190 = scmp.ne.s32.totalorder %s176, %s177
      %p191 = scmp.eq.s32.totalorder %s33, 1
      %p192 = por %p190, %p191
      %p194 = scmp.ne.s32.totalorder %s177, %s193
      %p195 = scmp.eq.s32.totalorder %s33, 0
      %p196 = por %p194, %p195
      %s197 = ssub.s32 %s27, %s34
      %p198 = scmp.eq.s32.totalorder %s197, 0
      %s200 = sadd.s32 %s199, 1
      %s201 = scalar_select %p198, %s199, %s200
      %p204 = pneg %p198
      %p205 = scmp.eq.s32.totalorder %s27, 1
      %p206 = por %p204, %p205
      %p207 = scmp.ne.s32.totalorder %s199, %s202
      %p208 = scmp.eq.s32.totalorder %s27, 0
      %p209 = por %p207, %p208
      %p210 = scmp.ne.s32.totalorder %s199, %s202
      %p211 = scmp.eq.s32.totalorder %s32, 1
      %p212 = por %p210, %p211
      %p213 = scmp.ne.s32.totalorder %s202, %s203
      %p214 = scmp.eq.s32.totalorder %s32, 0
      %p215 = por %p213, %p214
      %p216 = scmp.ne.s32.totalorder %s202, %s203
      %p217 = scmp.eq.s32.totalorder %s33, 1
      %p218 = por %p216, %p217
      %p220 = scmp.ne.s32.totalorder %s203, %s219
      %p221 = scmp.eq.s32.totalorder %s33, 0
      %p222 = por %p220, %p221
      %s223 = ssub.s32 %s27, %s34
      %p224 = scmp.eq.s32.totalorder %s223, 0
      %s226 = sadd.s32 %s225, 1
      %s227 = scalar_select %p224, %s225, %s226
      %p230 = pneg %p224
      %p231 = scmp.eq.s32.totalorder %s27, 1
      %p232 = por %p230, %p231
      %p233 = scmp.ne.s32.totalorder %s225, %s228
      %p234 = scmp.eq.s32.totalorder %s27, 0
      %p235 = por %p233, %p234
      %p236 = scmp.ne.s32.totalorder %s225, %s228
      %p237 = scmp.eq.s32.totalorder %s32, 1
      %p238 = por %p236, %p237
      %p239 = scmp.ne.s32.totalorder %s228, %s229
      %p240 = scmp.eq.s32.totalorder %s32, 0
      %p241 = por %p239, %p240
      %p242 = scmp.ne.s32.totalorder %s228, %s229
      %p243 = scmp.eq.s32.totalorder %s33, 1
      %p244 = por %p242, %p243
      %p246 = scmp.ne.s32.totalorder %s229, %s245
      %p247 = scmp.eq.s32.totalorder %s33, 0
      %p248 = por %p246, %p247
      %s249 = ssub.s32 %s27, %s34
      %p250 = scmp.eq.s32.totalorder %s249, 0
      %s252 = sadd.s32 %s251, 1
      %s253 = scalar_select %p250, %s251, %s252
      %p256 = pneg %p250
      %p257 = scmp.eq.s32.totalorder %s27, 1
      %p258 = por %p256, %p257
      %p259 = scmp.ne.s32.totalorder %s251, %s254
      %p260 = scmp.eq.s32.totalorder %s27, 0
      %p261 = por %p259, %p260
      %p262 = scmp.ne.s32.totalorder %s251, %s254
      %p263 = scmp.eq.s32.totalorder %s32, 1
      %p264 = por %p262, %p263
      %p265 = scmp.ne.s32.totalorder %s254, %s255
      %p266 = scmp.eq.s32.totalorder %s32, 0
      %p267 = por %p265, %p266
      %p268 = scmp.ne.s32.totalorder %s254, %s255
      %p269 = scmp.eq.s32.totalorder %s33, 1
      %p270 = por %p268, %p269
      %p272 = scmp.ne.s32.totalorder %s255, %s271
      %p273 = scmp.eq.s32.totalorder %s33, 0
      %p274 = por %p272, %p273
      %s275 = ssub.s32 %s27, %s34
      %p276 = scmp.eq.s32.totalorder %s275, 0
      %s278 = sadd.s32 %s277, 1
      %s279 = scalar_select %p276, %s277, %s278
      %p282 = pneg %p276
      %p283 = scmp.eq.s32.totalorder %s27, 1
      %p284 = por %p282, %p283
      %p285 = scmp.ne.s32.totalorder %s277, %s280
      %p286 = scmp.eq.s32.totalorder %s27, 0
      %p287 = por %p285, %p286
      %p288 = scmp.ne.s32.totalorder %s277, %s280
      %p289 = scmp.eq.s32.totalorder %s32, 1
      %p290 = por %p288, %p289
      %p291 = scmp.ne.s32.totalorder %s280, %s281
      %p292 = scmp.eq.s32.totalorder %s32, 0
      %p293 = por %p291, %p292
      %p294 = scmp.ne.s32.totalorder %s280, %s281
      %p295 = scmp.eq.s32.totalorder %s33, 1
      %p296 = por %p294, %p295
      %p298 = scmp.ne.s32.totalorder %s281, %s297
      %p299 = scmp.eq.s32.totalorder %s33, 0
      %p300 = por %p298, %p299
      %s301 = ssub.s32 %s27, %s34
      %p302 = scmp.eq.s32.totalorder %s301, 0
      %s304 = sadd.s32 %s303, 1
      %s305 = scalar_select %p302, %s303, %s304
      %p308 = pneg %p302
      %p309 = scmp.eq.s32.totalorder %s27, 1
      %p310 = por %p308, %p309
      %p311 = scmp.ne.s32.totalorder %s303, %s306
      %p312 = scmp.eq.s32.totalorder %s27, 0
      %p313 = por %p311, %p312
      %p314 = scmp.ne.s32.totalorder %s303, %s306
      %p315 = scmp.eq.s32.totalorder %s32, 1
      %p316 = por %p314, %p315
      %p317 = scmp.ne.s32.totalorder %s306, %s307
      %p318 = scmp.eq.s32.totalorder %s32, 0
      %p319 = por %p317, %p318
      %p320 = scmp.ne.s32.totalorder %s306, %s307
      %p321 = scmp.eq.s32.totalorder %s33, 1
      %p322 = por %p320, %p321
      %p324 = scmp.ne.s32.totalorder %s307, %s323
      %p325 = scmp.eq.s32.totalorder %s33, 0
      %p326 = por %p324, %p325
      %s327 = ssub.s32 %s27, %s34
      %p328 = scmp.eq.s32.totalorder %s327, 0
      %s330 = sadd.s32 %s329, 1
      %s331 = scalar_select %p328, %s329, %s330
      %p334 = pneg %p328
      %p335 = scmp.eq.s32.totalorder %s27, 1
      %p336 = por %p334, %p335
      %p337 = scmp.ne.s32.totalorder %s329, %s332
      %p338 = scmp.eq.s32.totalorder %s27, 0
      %p339 = por %p337, %p338
      %p340 = scmp.ne.s32.totalorder %s329, %s332
      %p341 = scmp.eq.s32.totalorder %s32, 1
      %p342 = por %p340, %p341
      %p343 = scmp.ne.s32.totalorder %s332, %s333
      %p344 = scmp.eq.s32.totalorder %s32, 0
      %p345 = por %p343, %p344
      %p346 = scmp.ne.s32.totalorder %s332, %s333
      %p347 = scmp.eq.s32.totalorder %s33, 1
      %p348 = por %p346, %p347
      %p350 = scmp.ne.s32.totalorder %s333, %s349
      %p351 = scmp.eq.s32.totalorder %s33, 0
      %p352 = por %p350, %p351
      %s353 = ssub.s32 %s27, %s34
      %p354 = scmp.eq.s32.totalorder %s353, 0
      %s356 = sadd.s32 %s355, 1
      %s357 = scalar_select %p354, %s355, %s356
      %p360 = pneg %p354
      %p361 = scmp.eq.s32.totalorder %s27, 1
      %p362 = por %p360, %p361
      %p363 = scmp.ne.s32.totalorder %s355, %s358
      %p364 = scmp.eq.s32.totalorder %s27, 0
      %p365 = por %p363, %p364
      %p366 = scmp.ne.s32.totalorder %s355, %s358
      %p367 = scmp.eq.s32.totalorder %s32, 1
      %p368 = por %p366, %p367
      %p369 = scmp.ne.s32.totalorder %s358, %s359
      %p370 = scmp.eq.s32.totalorder %s32, 0
      %p371 = por %p369, %p370
      %p372 = scmp.ne.s32.totalorder %s358, %s359
      %p373 = scmp.eq.s32.totalorder %s33, 1
      %p374 = por %p372, %p373
      %p376 = scmp.ne.s32.totalorder %s359, %s375
      %p377 = scmp.eq.s32.totalorder %s33, 0
      %p378 = por %p376, %p377
      %s379 = ssub.s32 %s27, %s34
      %p380 = scmp.eq.s32.totalorder %s379, 0
      %s382 = sadd.s32 %s381, 1
      %s383 = scalar_select %p380, %s381, %s382
      %p386 = pneg %p380
      %p387 = scmp.eq.s32.totalorder %s27, 1
      %p388 = por %p386, %p387
      %p389 = scmp.ne.s32.totalorder %s381, %s384
      %p390 = scmp.eq.s32.totalorder %s27, 0
      %p391 = por %p389, %p390
      %p392 = scmp.ne.s32.totalorder %s381, %s384
      %p393 = scmp.eq.s32.totalorder %s32, 1
      %p394 = por %p392, %p393
      %p395 = scmp.ne.s32.totalorder %s384, %s385
      %p396 = scmp.eq.s32.totalorder %s32, 0
      %p397 = por %p395, %p396
      %p398 = scmp.ne.s32.totalorder %s384, %s385
      %p399 = scmp.eq.s32.totalorder %s33, 1
      %p400 = por %p398, %p399
      %p402 = scmp.ne.s32.totalorder %s385, %s401
      %p403 = scmp.eq.s32.totalorder %s33, 0
      %p404 = por %p402, %p403
      %s405 = ssub.s32 %s27, %s34
      %p406 = scmp.eq.s32.totalorder %s405, 0
      %s408 = sadd.s32 %s407, 1
      %s409 = scalar_select %p406, %s407, %s408
      %p412 = pneg %p406
      %p413 = scmp.eq.s32.totalorder %s27, 1
      %p414 = por %p412, %p413
      %p415 = scmp.ne.s32.totalorder %s407, %s410
      %p416 = scmp.eq.s32.totalorder %s27, 0
      %p417 = por %p415, %p416
      %p418 = scmp.ne.s32.totalorder %s407, %s410
      %p419 = scmp.eq.s32.totalorder %s32, 1
      %p420 = por %p418, %p419
      %p421 = scmp.ne.s32.totalorder %s410, %s411
      %p422 = scmp.eq.s32.totalorder %s32, 0
      %p423 = por %p421, %p422
      %p424 = scmp.ne.s32.totalorder %s410, %s411
      %p425 = scmp.eq.s32.totalorder %s33, 1
      %p426 = por %p424, %p425
      %p428 = scmp.ne.s32.totalorder %s411, %s427
      %p429 = scmp.eq.s32.totalorder %s33, 0
      %p430 = por %p428, %p429
      %s432 = sadd.s32 %s431, 1
      %p435 = scmp.eq.s32.totalorder %s27, 1
      %p436 = scmp.ne.s32.totalorder %s431, %s433
      %p437 = scmp.eq.s32.totalorder %s27, 0
      %p438 = por %p436, %p437
      %p439 = scmp.ne.s32.totalorder %s431, %s433
      %p440 = scmp.eq.s32.totalorder %s32, 1
      %p441 = por %p439, %p440
      %p442 = scmp.ne.s32.totalorder %s433, %s434
      %p443 = scmp.eq.s32.totalorder %s32, 0
      %p444 = por %p442, %p443
      %p445 = scmp.ne.s32.totalorder %s433, %s434
      %p446 = scmp.eq.s32.totalorder %s33, 1
      %p447 = por %p445, %p446
      %p449 = scmp.ne.s32.totalorder %s434, %s448
      %p450 = scmp.eq.s32.totalorder %s33, 0
      %p451 = por %p449, %p450
      %s453 = sadd.s32 %s452, 1
      %p456 = scmp.eq.s32.totalorder %s27, 1
      %p457 = scmp.ne.s32.totalorder %s452, %s454
      %p458 = scmp.eq.s32.totalorder %s27, 0
      %p459 = por %p457, %p458
      %p460 = scmp.ne.s32.totalorder %s452, %s454
      %p461 = scmp.eq.s32.totalorder %s32, 1
      %p462 = por %p460, %p461
      %p463 = scmp.ne.s32.totalorder %s454, %s455
      %p464 = scmp.eq.s32.totalorder %s32, 0
      %p465 = por %p463, %p464
      %p466 = scmp.ne.s32.totalorder %s454, %s455
      %p467 = scmp.eq.s32.totalorder %s33, 1
      %p468 = por %p466, %p467
      %p470 = scmp.ne.s32.totalorder %s455, %s469
      %p471 = scmp.eq.s32.totalorder %s33, 0
      %p472 = por %p470, %p471
      %s474 = sadd.s32 %s473, 1
      %p477 = scmp.eq.s32.totalorder %s27, 1
      %p478 = scmp.ne.s32.totalorder %s473, %s475
      %p479 = scmp.eq.s32.totalorder %s27, 0
      %p480 = por %p478, %p479
      %p481 = scmp.ne.s32.totalorder %s473, %s475
      %p482 = scmp.eq.s32.totalorder %s32, 1
      %p483 = por %p481, %p482
      %p484 = scmp.ne.s32.totalorder %s475, %s476
      %p485 = scmp.eq.s32.totalorder %s32, 0
      %p486 = por %p484, %p485
      %p487 = scmp.ne.s32.totalorder %s475, %s476
      %p488 = scmp.eq.s32.totalorder %s33, 1
      %p489 = por %p487, %p488
      %p491 = scmp.ne.s32.totalorder %s476, %s490
      %p492 = scmp.eq.s32.totalorder %s33, 0
      %p493 = por %p491, %p492
      %s495 = sadd.s32 %s494, 1
      %p498 = scmp.eq.s32.totalorder %s27, 1
      %p499 = scmp.ne.s32.totalorder %s494, %s496
      %p500 = scmp.eq.s32.totalorder %s27, 0
      %p501 = por %p499, %p500
      %p502 = scmp.ne.s32.totalorder %s494, %s496
      %p503 = scmp.eq.s32.totalorder %s32, 1
      %p504 = por %p502, %p503
      %p505 = scmp.ne.s32.totalorder %s496, %s497
      %p506 = scmp.eq.s32.totalorder %s32, 0
      %p507 = por %p505, %p506
      %p508 = scmp.ne.s32.totalorder %s496, %s497
      %p509 = scmp.eq.s32.totalorder %s33, 1
      %p510 = por %p508, %p509
      %p512 = scmp.ne.s32.totalorder %s497, %s511
      %p513 = scmp.eq.s32.totalorder %s33, 0
      %p514 = por %p512, %p513
      %s516 = sadd.s32 %s515, 1
      %p519 = scmp.eq.s32.totalorder %s27, 1
      %p520 = scmp.ne.s32.totalorder %s515, %s517
      %p521 = scmp.eq.s32.totalorder %s27, 0
      %p522 = por %p520, %p521
      %p523 = scmp.ne.s32.totalorder %s515, %s517
      %p524 = scmp.eq.s32.totalorder %s32, 1
      %p525 = por %p523, %p524
      %p526 = scmp.ne.s32.totalorder %s517, %s518
      %p527 = scmp.eq.s32.totalorder %s32, 0
      %p528 = por %p526, %p527
      %p529 = scmp.ne.s32.totalorder %s517, %s518
      %p530 = scmp.eq.s32.totalorder %s33, 1
      %p531 = por %p529, %p530
      %p533 = scmp.ne.s32.totalorder %s518, %s532
      %p534 = scmp.eq.s32.totalorder %s33, 0
      %p535 = por %p533, %p534
      %p536 = scmp.le.s32.totalorder 1, %s27
      %p537 = scmp.lt.s32.totalorder %s27, 3
      %p538 = pnand %p536, %p537
      %p539 = pneg %p538
      // Predicated region
      $region9: #{sentence_classifier_forward.1} parent=5 // pred_check
        _
      $region10: #{sentence_classifier_forward.1} parent=5 // pred_check_branch
        %541 = sbr.rel (%p538) target = $region12
      $region11: #{sentence_classifier_forward.1} parent=5 // pred_region
        %s542 = ssub.s32 %s27, 1
        // Predicated region
        $region13: #{sentence_classifier_forward.1} parent=11 // pred_check
          %p543 = pneg %p48
        $region14: #{sentence_classifier_forward.1} parent=11 // pred_check_branch
          %545 = sbr.rel (%p543) target = $region16
        $region15: #{sentence_classifier_forward.1} parent=11 // pred_region
          _
        $region16: #{sentence_classifier_forward.1} parent=11 // pred_fallthru
          _
        // Predicated region
        $region17: #{sentence_classifier_forward.1} parent=11 // pred_check
          %p546 = pneg %p69
        $region18: #{sentence_classifier_forward.1} parent=11 // pred_check_branch
          %548 = sbr.rel (%p546) target = $region20
        $region19: #{sentence_classifier_forward.1} parent=11 // pred_region
          _
        $region20: #{sentence_classifier_forward.1} parent=11 // pred_fallthru
          _
        // Predicated region
        $region21: #{sentence_classifier_forward.1} parent=11 // pred_check
          %p549 = pneg %p90
        $region22: #{sentence_classifier_forward.1} parent=11 // pred_check_branch
          %551 = sbr.rel (%p549) target = $region24
        $region23: #{sentence_classifier_forward.1} parent=11 // pred_region
          _
        $region24: #{sentence_classifier_forward.1} parent=11 // pred_fallthru
          _
        // Predicated region
        $region25: #{sentence_classifier_forward.1} parent=11 // pred_check
          %p552 = pneg %p111
        $region26: #{sentence_classifier_forward.1} parent=11 // pred_check_branch
          %554 = sbr.rel (%p552) target = $region28
        $region27: #{sentence_classifier_forward.1} parent=11 // pred_region
          _
        $region28: #{sentence_classifier_forward.1} parent=11 // pred_fallthru
          _
        // Predicated region
        $region29: #{sentence_classifier_forward.1} parent=11 // pred_check
          %p555 = pneg %p444
        $region30: #{sentence_classifier_forward.1} parent=11 // pred_check_branch
          %557 = sbr.rel (%p555) target = $region32
        $region31: #{sentence_classifier_forward.1} parent=11 // pred_region
          _
        $region32: #{sentence_classifier_forward.1} parent=11 // pred_fallthru
          _
        // Predicated region
        $region33: #{sentence_classifier_forward.1} parent=11 // pred_check
          %p558 = pneg %p465
        $region34: #{sentence_classifier_forward.1} parent=11 // pred_check_branch
          %560 = sbr.rel (%p558) target = $region36
        $region35: #{sentence_classifier_forward.1} parent=11 // pred_region
          _
        $region36: #{sentence_classifier_forward.1} parent=11 // pred_fallthru
          _
        // Predicated region
        $region37: #{sentence_classifier_forward.1} parent=11 // pred_check
          %p561 = pneg %p486
        $region38: #{sentence_classifier_forward.1} parent=11 // pred_check_branch
          %563 = sbr.rel (%p561) target = $region40
        $region39: #{sentence_classifier_forward.1} parent=11 // pred_region
          _
        $region40: #{sentence_classifier_forward.1} parent=11 // pred_fallthru
          _
        // Predicated region
        $region41: #{sentence_classifier_forward.1} parent=11 // pred_check
          %p564 = pneg %p507
        $region42: #{sentence_classifier_forward.1} parent=11 // pred_check_branch
          %566 = sbr.rel (%p564) target = $region44
        $region43: #{sentence_classifier_forward.1} parent=11 // pred_region
          _
        $region44: #{sentence_classifier_forward.1} parent=11 // pred_fallthru
          _
      $region12: #{sentence_classifier_forward.1} parent=5 // pred_fallthru
        _
      %p567 = scmp.lt.s32.totalorder %s27, 2
      // Predicated region
      $region45: #{sentence_classifier_forward.1} parent=5 // pred_check
        %p568 = pneg %p567
      $region46: #{sentence_classifier_forward.1} parent=5 // pred_check_branch
        %570 = sbr.rel (%p568) target = $region48
      $region47: #{sentence_classifier_forward.1} parent=5 // pred_region
        // Predicated region
        $region49: #{sentence_classifier_forward.1} parent=47 // pred_check
          %p571 = pneg %p131
        $region50: #{sentence_classifier_forward.1} parent=47 // pred_check_branch
          %573 = sbr.rel (%p571) target = $region52
        $region51: #{sentence_classifier_forward.1} parent=47 // pred_region
          %p574 = scmp.lt.s32.totalorder %s27, 1
          %s575 = scalar_select %p574, %s27, 1
          %s576 = smul.addr %s575, 4
          %s577 = smul.addr %s576, 4
          %s578 = scalar_lea.vmem %s4, %s577
        $region52: #{sentence_classifier_forward.1} parent=47 // pred_fallthru
          _
        // Predicated region
        $region53: #{sentence_classifier_forward.1} parent=47 // pred_check
          %p579 = pneg %p157
        $region54: #{sentence_classifier_forward.1} parent=47 // pred_check_branch
          %581 = sbr.rel (%p579) target = $region56
        $region55: #{sentence_classifier_forward.1} parent=47 // pred_region
          %p582 = scmp.lt.s32.totalorder %s27, 1
          %s583 = scalar_select %p582, %s27, 1
          %s584 = scalar_lea.vmem %s5, %s583
        $region56: #{sentence_classifier_forward.1} parent=47 // pred_fallthru
          _
        // Predicated region
        $region57: #{sentence_classifier_forward.1} parent=47 // pred_check
          %p585 = pneg %p183
        $region58: #{sentence_classifier_forward.1} parent=47 // pred_check_branch
          %587 = sbr.rel (%p585) target = $region60
        $region59: #{sentence_classifier_forward.1} parent=47 // pred_region
          %p588 = scmp.lt.s32.totalorder %s27, 1
          %s589 = scalar_select %p588, %s27, 1
          %s590 = smul.addr %s589, 4
          %s591 = smul.addr %s590, 4
          %s592 = scalar_lea.vmem %s6, %s591
        $region60: #{sentence_classifier_forward.1} parent=47 // pred_fallthru
          _
        // Predicated region
        $region61: #{sentence_classifier_forward.1} parent=47 // pred_check
          %p593 = pneg %p209
        $region62: #{sentence_classifier_forward.1} parent=47 // pred_check_branch
          %595 = sbr.rel (%p593) target = $region64
        $region63: #{sentence_classifier_forward.1} parent=47 // pred_region
          %p596 = scmp.lt.s32.totalorder %s27, 1
          %s597 = scalar_select %p596, %s27, 1
          %s598 = scalar_lea.vmem %s7, %s597
        $region64: #{sentence_classifier_forward.1} parent=47 // pred_fallthru
          _
        // Predicated region
        $region65: #{sentence_classifier_forward.1} parent=47 // pred_check
          %p599 = pneg %p235
        $region66: #{sentence_classifier_forward.1} parent=47 // pred_check_branch
          %601 = sbr.rel (%p599) target = $region68
        $region67: #{sentence_classifier_forward.1} parent=47 // pred_region
          %p602 = scmp.lt.s32.totalorder %s27, 1
          %s603 = scalar_select %p602, %s27, 1
          %s604 = scalar_lea.vmem %s8, %s603
        $region68: #{sentence_classifier_forward.1} parent=47 // pred_fallthru
          _
        // Predicated region
        $region69: #{sentence_classifier_forward.1} parent=47 // pred_check
          %p605 = pneg %p261
        $region70: #{sentence_classifier_forward.1} parent=47 // pred_check_branch
          %607 = sbr.rel (%p605) target = $region72
        $region71: #{sentence_classifier_forward.1} parent=47 // pred_region
          %p608 = scmp.lt.s32.totalorder %s27, 1
          %s609 = scalar_select %p608, %s27, 1
          %s610 = scalar_lea.vmem %s9, %s609
        $region72: #{sentence_classifier_forward.1} parent=47 // pred_fallthru
          _
        // Predicated region
        $region73: #{sentence_classifier_forward.1} parent=47 // pred_check
          %p611 = pneg %p287
        $region74: #{sentence_classifier_forward.1} parent=47 // pred_check_branch
          %613 = sbr.rel (%p611) target = $region76
        $region75: #{sentence_classifier_forward.1} parent=47 // pred_region
          %p614 = scmp.lt.s32.totalorder %s27, 1
          %s615 = scalar_select %p614, %s27, 1
          %s616 = smul.addr %s615, 4
          %s617 = smul.addr %s616, 4
          %s618 = scalar_lea.vmem %s10, %s617
        $region76: #{sentence_classifier_forward.1} parent=47 // pred_fallthru
          _
        // Predicated region
        $region77: #{sentence_classifier_forward.1} parent=47 // pred_check
          %p619 = pneg %p313
        $region78: #{sentence_classifier_forward.1} parent=47 // pred_check_branch
          %621 = sbr.rel (%p619) target = $region80
        $region79: #{sentence_classifier_forward.1} parent=47 // pred_region
          %p622 = scmp.lt.s32.totalorder %s27, 1
          %s623 = scalar_select %p622, %s27, 1
          %s624 = scalar_lea.vmem %s11, %s623
        $region80: #{sentence_classifier_forward.1} parent=47 // pred_fallthru
          _
        // Predicated region
        $region81: #{sentence_classifier_forward.1} parent=47 // pred_check
          %p625 = pneg %p339
        $region82: #{sentence_classifier_forward.1} parent=47 // pred_check_branch
          %627 = sbr.rel (%p625) target = $region84
        $region83: #{sentence_classifier_forward.1} parent=47 // pred_region
          %p628 = scmp.lt.s32.totalorder %s27, 1
          %s629 = scalar_select %p628, %s27, 1
          %s630 = smul.addr %s629, 16
          %s631 = smul.addr %s630, 4
          %s632 = scalar_lea.vmem %s12, %s631
        $region84: #{sentence_classifier_forward.1} parent=47 // pred_fallthru
          _
        // Predicated region
        $region85: #{sentence_classifier_forward.1} parent=47 // pred_check
          %p633 = pneg %p365
        $region86: #{sentence_classifier_forward.1} parent=47 // pred_check_branch
          %635 = sbr.rel (%p633) target = $region88
        $region87: #{sentence_classifier_forward.1} parent=47 // pred_region
          %p636 = scmp.lt.s32.totalorder %s27, 1
          %s637 = scalar_select %p636, %s27, 1
          %s638 = scalar_lea.vmem %s13, %s637
        $region88: #{sentence_classifier_forward.1} parent=47 // pred_fallthru
          _
        // Predicated region
        $region89: #{sentence_classifier_forward.1} parent=47 // pred_check
          %p639 = pneg %p391
        $region90: #{sentence_classifier_forward.1} parent=47 // pred_check_branch
          %641 = sbr.rel (%p639) target = $region92
        $region91: #{sentence_classifier_forward.1} parent=47 // pred_region
          %p642 = scmp.lt.s32.totalorder %s27, 1
          %s643 = scalar_select %p642, %s27, 1
          %s644 = scalar_lea.vmem %s14, %s643
        $region92: #{sentence_classifier_forward.1} parent=47 // pred_fallthru
          _
        // Predicated region
        $region93: #{sentence_classifier_forward.1} parent=47 // pred_check
          %p645 = pneg %p417
        $region94: #{sentence_classifier_forward.1} parent=47 // pred_check_branch
          %647 = sbr.rel (%p645) target = $region96
        $region95: #{sentence_classifier_forward.1} parent=47 // pred_region
          %p648 = scmp.lt.s32.totalorder %s27, 1
          %s649 = scalar_select %p648, %s27, 1
          %s650 = scalar_lea.vmem %s15, %s649
        $region96: #{sentence_classifier_forward.1} parent=47 // pred_fallthru
          _
      $region48: #{sentence_classifier_forward.1} parent=5 // pred_fallthru
        _
      %p651 = scmp.le.s32.totalorder 1, %s27
      %p652 = scmp.lt.s32.totalorder %s27, 3
      %p653 = pnand %p651, %p652
      %p654 = pneg %p653
      // Predicated region
      $region97: #{sentence_classifier_forward.1} parent=5 // pred_check
        _
      $region98: #{sentence_classifier_forward.1} parent=5 // pred_check_branch
        %656 = sbr.rel (%p653) target = $region100
      $region99: #{sentence_classifier_forward.1} parent=5 // pred_region
        %s657 = ssub.s32 %s27, 1
        %p658 = pneg %p48
        %p659 = pneg %p45
        %p660 = pneg %p69
        %p661 = pneg %p66
        %p662 = pneg %p90
        %p663 = pneg %p87
        %p664 = pneg %p111
        %p665 = pneg %p108
        %p666 = scmp.lt.s32.totalorder %s32, 1
        %s667 = scalar_select %p666, %s32, 1
        %s668 = smul.addr %s667, 4
        %s669 = smul.addr %s668, 4
        %s670 = scalar_lea.vmem %s4, %s669
        %p671 = pneg %p137
        %p672 = pneg %p134
        %p673 = scmp.lt.s32.totalorder %s32, 1
        %s674 = scalar_select %p673, %s32, 1
        %s675 = scalar_lea.vmem %s5, %s674
        %p676 = pneg %p163
        %p677 = pneg %p160
        %p678 = scmp.lt.s32.totalorder %s32, 1
        %s679 = scalar_select %p678, %s32, 1
        %s680 = smul.addr %s679, 4
        %s681 = smul.addr %s680, 4
        %s682 = scalar_lea.vmem %s6, %s681
        %p683 = pneg %p189
        %p684 = pneg %p186
        %p685 = scmp.lt.s32.totalorder %s32, 1
        %s686 = scalar_select %p685, %s32, 1
        %s687 = scalar_lea.vmem %s7, %s686
        %p688 = pneg %p215
        %p689 = pneg %p212
        %p690 = scmp.lt.s32.totalorder %s32, 1
        %s691 = scalar_select %p690, %s32, 1
        %s692 = scalar_lea.vmem %s8, %s691
        %p693 = pneg %p241
        %p694 = pneg %p238
        %p695 = scmp.lt.s32.totalorder %s32, 1
        %s696 = scalar_select %p695, %s32, 1
        %s697 = scalar_lea.vmem %s9, %s696
        %p698 = pneg %p267
        %p699 = pneg %p264
        %p700 = scmp.lt.s32.totalorder %s32, 1
        %s701 = scalar_select %p700, %s32, 1
        %s702 = smul.addr %s701, 4
        %s703 = smul.addr %s702, 4
        %s704 = scalar_lea.vmem %s10, %s703
        %p705 = pneg %p293
        %p706 = pneg %p290
        %p707 = scmp.lt.s32.totalorder %s32, 1
        %s708 = scalar_select %p707, %s32, 1
        %s709 = scalar_lea.vmem %s11, %s708
        %p710 = pneg %p319
        %p711 = pneg %p316
        %p712 = scmp.lt.s32.totalorder %s32, 1
        %s713 = scalar_select %p712, %s32, 1
        %s714 = smul.addr %s713, 16
        %s715 = smul.addr %s714, 4
        %s716 = scalar_lea.vmem %s12, %s715
        %p717 = pneg %p345
        %p718 = pneg %p342
        %p719 = scmp.lt.s32.totalorder %s32, 1
        %s720 = scalar_select %p719, %s32, 1
        %s721 = scalar_lea.vmem %s13, %s720
        %p722 = pneg %p371
        %p723 = pneg %p368
        %p724 = scmp.lt.s32.totalorder %s32, 1
        %s725 = scalar_select %p724, %s32, 1
        %s726 = scalar_lea.vmem %s14, %s725
        %p727 = pneg %p397
        %p728 = pneg %p394
        %p729 = scmp.lt.s32.totalorder %s32, 1
        %s730 = scalar_select %p729, %s32, 1
        %s731 = scalar_lea.vmem %s15, %s730
        %p732 = pneg %p423
        %p733 = pneg %p420
        %p734 = pneg %p444
        %p735 = pneg %p441
        %p736 = pneg %p465
        %p737 = pneg %p462
        %p738 = pneg %p486
        %p739 = pneg %p483
        %p740 = pneg %p507
        %p741 = pneg %p504
        %p742 = pneg %p528
        %p743 = pneg %p525
        %p744 = scmp.lt.s32.totalorder %s32, 1
        %s745 = scalar_select %p744, %s32, 1
        %s746 = smul.addr %s745, 4
        %s747 = smul.addr %s746, 4
        %s748 = scalar_lea.vmem %s4, %s747
        %p749 = scmp.lt.s32.totalorder %s32, 1
        %s750 = scalar_select %p749, %s32, 1
        %s751 = scalar_lea.vmem %s5, %s750
        %p752 = scmp.lt.s32.totalorder %s32, 1
        %s753 = scalar_select %p752, %s32, 1
        %s754 = smul.addr %s753, 4
        %s755 = smul.addr %s754, 4
        %s756 = scalar_lea.vmem %s6, %s755
        %p757 = scmp.lt.s32.totalorder %s32, 1
        %s758 = scalar_select %p757, %s32, 1
        %s759 = scalar_lea.vmem %s7, %s758
        %p760 = scmp.lt.s32.totalorder %s32, 1
        %s761 = scalar_select %p760, %s32, 1
        %s762 = scalar_lea.vmem %s8, %s761
        %p763 = scmp.lt.s32.totalorder %s32, 1
        %s764 = scalar_select %p763, %s32, 1
        %s765 = scalar_lea.vmem %s9, %s764
        %p766 = scmp.lt.s32.totalorder %s32, 1
        %s767 = scalar_select %p766, %s32, 1
        %s768 = smul.addr %s767, 4
        %s769 = smul.addr %s768, 4
        %s770 = scalar_lea.vmem %s10, %s769
        %p771 = scmp.lt.s32.totalorder %s32, 1
        %s772 = scalar_select %p771, %s32, 1
        %s773 = scalar_lea.vmem %s11, %s772
        %p774 = scmp.lt.s32.totalorder %s32, 1
        %s775 = scalar_select %p774, %s32, 1
        %s776 = smul.addr %s775, 16
        %s777 = smul.addr %s776, 4
        %s778 = scalar_lea.vmem %s12, %s777
        %p779 = scmp.lt.s32.totalorder %s32, 1
        %s780 = scalar_select %p779, %s32, 1
        %s781 = scalar_lea.vmem %s13, %s780
        %p782 = scmp.lt.s32.totalorder %s32, 1
        %s783 = scalar_select %p782, %s32, 1
        %s784 = scalar_lea.vmem %s14, %s783
        %p785 = scmp.lt.s32.totalorder %s32, 1
        %s786 = scalar_select %p785, %s32, 1
        %s787 = scalar_lea.vmem %s15, %s786
        %p789 = scmp.eq.s32.totalorder %s32, 0
        // Predicated region
        $region101: #{sentence_classifier_forward.1} parent=99 // pred_check
          %p790 = pneg %p789
        $region102: #{sentence_classifier_forward.1} parent=99 // pred_check_branch
          %792 = sbr.rel (%p790) target = $region104
        $region103: #{sentence_classifier_forward.1} parent=99 // pred_region
          %v793 = vld [vmem:[%s0] sm:$0xff]
          %v794 = vld [vmem:[%s0 + $0x8] sm:$0xff]
          %v795 = vld [vmem:[%s2] sm:$0x1]
          %v796 = vld [vmem:[%s3] sm:$0x1]
          %vm797 = vcmask 261120
          %v798 = vsel %vm797, %v793, 0.0
          %799 = vadd.xlane.f32.xlu0 %v798
          %v800 = vpop.xlane.xlu0 %799
          %v801 = vsel %vm797, %v794, 0.0
          %802 = vadd.xlane.f32.xlu0 %v801
          %v803 = vpop.xlane.xlu0 %802
          %v804 = vrcp.pop 32.0
          %v805 = vmul.f32 %v800, %v804
          %v806 = vmul.f32 %v803, %v804
          %v807 = vsub.f32 %v793, %v805
          %v808 = vsub.f32 %v794, %v806
          %v809 = vmul.f32 %v807, %v807
          %v810 = vmul.f32 %v808, %v808
          %v811 = vsel %vm797, %v809, 0.0
          %812 = vadd.xlane.f32.xlu0 %v811
          %v813 = vpop.xlane.xlu0 %812
          %v814 = vsel %vm797, %v810, 0.0
          %815 = vadd.xlane.f32.xlu0 %v814
          %v816 = vpop.xlane.xlu0 %815
          %v817 = vmul.f32 %v813, %v804
          %v818 = vmul.f32 %v816, %v804
          %v819 = vadd.f32 %v817, 1e-12
          %v820 = vadd.f32 %v818, 1e-12
          %v821 = vrsqrt.pop %v819
          %v822 = vrsqrt.pop %v820
          %v823 = vmul.f32 %v807, %v821
          %v824 = vmul.f32 %v808, %v822
          %v826 = vlaneseq
          %v827 = vshrl.u32 %v826, 7
          %v828 = vsub.s32 0, %v827
          %v829 = vrot.slane %v795, %v828
          %v831 = vmul.f32 %v823, %v829
          %v832 = vmul.f32 %v824, %v829
          %v834 = vlaneseq
          %v835 = vshrl.u32 %v834, 7
          %v836 = vsub.s32 0, %v835
          %v837 = vrot.slane %v796, %v836
          %v839 = vadd.f32 %v831, %v837
          %v840 = vadd.f32 %v832, %v837
          %841 = vst.msk [vmem:[#allocation2] sm:$0xff] %vm797, %v839
          %842 = vst.msk [vmem:[#allocation2 + $0x8] sm:$0xff] %vm797, %v840
        $region104: #{sentence_classifier_forward.1} parent=99 // pred_fallthru
          _
        %v843 = vld [vmem:[#allocation2] sm:$0xff]
        %v844 = vld [vmem:[#allocation2 + $0x8] sm:$0xff]
        %v845 = vpack.c.bf16 %v844, %v843
        %v846 = vld [vmem:[%s748] sm:$0xf]
        %v847 = vld [vmem:[%s748 + $0x4] sm:$0xf]
        %v848 = vld [vmem:[%s748 + $0x8] sm:$0xf]
        %v849 = vld [vmem:[%s748 + $0xc] sm:$0xf]
        %v850 = vld [vmem:[%s751] sm:$0x1]
        %v852 = vlaneseq
        %v853 = vshrl.u32 %v852, 7
        %v854 = vsub.s32 0, %v853
        %v855 = vrot.slane %v850, %v854
        %v861 = vunpack.c.l.b16 %v846
        %v862 = vunpack.c.l.b16 %v847
        %v863 = vunpack.c.l.b16 %v848
        %v864 = vunpack.c.l.b16 %v849
        %v865 = vpack.c.b16 %v862, %v861
        %v866 = vpack.c.b16 %v864, %v863
        %vm869 = vcmask 261120
        %v871 = vsel %vm869, %v845, 0
        %873 = vmatprep.subr.bf16.mxu0 0
        %874 = vmatpush1.bf16.msra.mxu0 %v865
        %875 = vmatprep.subr.bf16.mxu0 0
        %876 = vmatpush1.bf16.msra.mxu0 %v866
        %877 = vmatprep.subr.bf16.mxu0 0
        %878 = vmatpush1.bf16.msra.mxu0 0
        %879 = vmatprep.subr.bf16.mxu0 0
        %880 = vmatpush1.bf16.msra.mxu0 0
        %881 = vmatprep.subr.bf16.mxu0 0
        %882 = vmatpush1.bf16.msra.mxu0 0
        %883 = vmatprep.subr.bf16.mxu0 0
        %884 = vmatpush1.bf16.msra.mxu0 0
        %885 = vmatprep.subr.bf16.mxu0 0
        %886 = vmatpush1.bf16.msra.mxu0 0
        %887 = vmatprep.subr.bf16.mxu0 0
        %888 = vmatpush1.bf16.msra.mxu0 0
        %889 = vmatprep.subr.bf16.mxu0 0
        %890 = vmatpush1.bf16.msra.mxu0 0
        %891 = vmatprep.subr.bf16.mxu0 0
        %892 = vmatpush1.bf16.msra.mxu0 0
        %893 = vmatprep.subr.bf16.mxu0 0
        %894 = vmatpush1.bf16.msra.mxu0 0
        %895 = vmatprep.subr.bf16.mxu0 0
        %896 = vmatpush1.bf16.msra.mxu0 0
        %897 = vmatprep.subr.bf16.mxu0 0
        %898 = vmatpush1.bf16.msra.mxu0 0
        %899 = vmatprep.subr.bf16.mxu0 0
        %900 = vmatpush1.bf16.msra.mxu0 0
        %901 = vmatprep.subr.bf16.mxu0 0
        %902 = vmatpush1.bf16.msra.mxu0 0
        %903 = vmatprep.subr.bf16.mxu0 0
        %904 = vmatpush1.bf16.msra.mxu0 0
        %905 = vmatprep.mubr.bf16.mxu0 0
        %906 = vmatmul.mubr.bf16.gmra.mrb[0].mxu0 %v871
        %v907 = vpop.f32.mrb[0].mxu0
        %v908 = vadd.f32 %v855, %v907
        %v909 = vpop.f32.mrb[0].mxu0
        %v910 = vpop.f32.mrb[0].mxu0
        %v911 = vadd.f32 %v855, %v910
        %v912 = vpop.f32.mrb[0].mxu0
        %913 = vdwg.mxu0
        %v914 = vld [vmem:[%s1] sm:$0x1]
        %v915 = vld [vmem:[%s1 + $0x1] sm:$0x1]
        %v918 = vlaneseq
        %v919 = vshrl.u32 %v918, 7
        %v920 = vsub.s32 0, %v919
        %v921 = vrot.slane %v914, %v920
        %v922 = vlaneseq
        %v923 = vshrl.u32 %v922, 7
        %v924 = vsub.s32 0, %v923
        %v925 = vrot.slane %v915, %v924
        %v928 = vpack.c.bf16 %v908, %v908
        %v929 = vpack.c.bf16 %v911, %v911
        %931 = vrot.lane.b32.xlu0 %v928, 96
        %v932 = vpop.permute.xlu0 %931
        %vm933 = vcmask 130048
        %v935 = vsel %vm933, %v928, 0
        %v938 = vsel %vm933, %v932, 0
        %940 = vmatprep.subr.bf16.mxu0 0
        %941 = vmatpush1.bf16.xpose.msra.mxu0 %v938
        %942 = vmatprep.subr.bf16.mxu0 0
        %943 = vmatpush1.bf16.xpose.msra.mxu0 0
        %944 = vmatprep.subr.bf16.mxu0 0
        %945 = vmatpush1.bf16.xpose.msra.mxu0 0
        %946 = vmatprep.subr.bf16.mxu0 0
        %947 = vmatpush1.bf16.xpose.msra.mxu0 0
        %948 = vmatprep.subr.bf16.mxu0 0
        %949 = vmatpush1.bf16.xpose.msra.mxu0 0
        %950 = vmatprep.subr.bf16.mxu0 0
        %951 = vmatpush1.bf16.xpose.msra.mxu0 0
        %952 = vmatprep.subr.bf16.mxu0 0
        %953 = vmatpush1.bf16.xpose.msra.mxu0 0
        %954 = vmatprep.subr.bf16.mxu0 0
        %955 = vmatpush1.bf16.xpose.msra.mxu0 0
        %956 = vmatprep.subr.bf16.mxu0 0
        %957 = vmatpush1.bf16.xpose.msra.mxu0 0
        %958 = vmatprep.subr.bf16.mxu0 0
        %959 = vmatpush1.bf16.xpose.msra.mxu0 0
        %960 = vmatprep.subr.bf16.mxu0 0
        %961 = vmatpush1.bf16.xpose.msra.mxu0 0
        %962 = vmatprep.subr.bf16.mxu0 0
        %963 = vmatpush1.bf16.xpose.msra.mxu0 0
        %964 = vmatprep.subr.bf16.mxu0 0
        %965 = vmatpush1.bf16.xpose.msra.mxu0 0
        %966 = vmatprep.subr.bf16.mxu0 0
        %967 = vmatpush1.bf16.xpose.msra.mxu0 0
        %968 = vmatprep.subr.bf16.mxu0 0
        %969 = vmatpush1.bf16.xpose.msra.mxu0 0
        %970 = vmatprep.subr.bf16.mxu0 0
        %971 = vmatpush1.bf16.xpose.msra.mxu0 0
        %972 = vmatprep.mubr.bf16.mxu0 0
        %973 = vmatmul.mubr.bf16.gmra.mrb[0].mxu0 %v935
        %v974 = vpop.f32.mrb[0].mxu0
        %v975 = vadd.f32 0.0, %v974
        %v976 = vpop.f32.mrb[0].mxu0
        %v977 = vpop.f32.mrb[0].mxu0
        %v978 = vpop.f32.mrb[0].mxu0
        %979 = vdwg.mxu0
        %981 = vrot.lane.b32.xlu0 %v929, 96
        %v982 = vpop.permute.xlu0 %981
        %v984 = vsel %vm933, %v929, 0
        %v987 = vsel %vm933, %v982, 0
        %989 = vmatprep.subr.bf16.mxu0 0
        %990 = vmatpush1.bf16.xpose.msra.mxu0 %v987
        %991 = vmatprep.subr.bf16.mxu0 0
        %992 = vmatpush1.bf16.xpose.msra.mxu0 0
        %993 = vmatprep.subr.bf16.mxu0 0
        %994 = vmatpush1.bf16.xpose.msra.mxu0 0
        %995 = vmatprep.subr.bf16.mxu0 0
        %996 = vmatpush1.bf16.xpose.msra.mxu0 0
        %997 = vmatprep.subr.bf16.mxu0 0
        %998 = vmatpush1.bf16.xpose.msra.mxu0 0
        %999 = vmatprep.subr.bf16.mxu0 0
        %1000 = vmatpush1.bf16.xpose.msra.mxu0 0
        %1001 = vmatprep.subr.bf16.mxu0 0
        %1002 = vmatpush1.bf16.xpose.msra.mxu0 0
        %1003 = vmatprep.subr.bf16.mxu0 0
        %1004 = vmatpush1.bf16.xpose.msra.mxu0 0
        %1005 = vmatprep.subr.bf16.mxu0 0
        %1006 = vmatpush1.bf16.xpose.msra.mxu0 0
        %1007 = vmatprep.subr.bf16.mxu0 0
        %1008 = vmatpush1.bf16.xpose.msra.mxu0 0
        %1009 = vmatprep.subr.bf16.mxu0 0
        %1010 = vmatpush1.bf16.xpose.msra.mxu0 0
        %1011 = vmatprep.subr.bf16.mxu0 0
        %1012 = vmatpush1.bf16.xpose.msra.mxu0 0
        %1013 = vmatprep.subr.bf16.mxu0 0
        %1014 = vmatpush1.bf16.xpose.msra.mxu0 0
        %1015 = vmatprep.subr.bf16.mxu0 0
        %1016 = vmatpush1.bf16.xpose.msra.mxu0 0
        %1017 = vmatprep.subr.bf16.mxu0 0
        %1018 = vmatpush1.bf16.xpose.msra.mxu0 0
        %1019 = vmatprep.subr.bf16.mxu0 0
        %1020 = vmatpush1.bf16.xpose.msra.mxu0 0
        %1021 = vmatprep.mubr.bf16.mxu0 0
        %1022 = vmatmul.mubr.bf16.gmra.mrb[0].mxu0 %v984
        %v1023 = vpop.f32.mrb[0].mxu0
        %v1024 = vadd.f32 0.0, %v1023
        %v1025 = vpop.f32.mrb[0].mxu0
        %v1026 = vpop.f32.mrb[0].mxu0
        %v1027 = vpop.f32.mrb[0].mxu0
        %1028 = vdwg.mxu0
        %v1029 = vmul.f32 %v975, 0.25
        %v1030 = vmul.f32 %v1024, 0.25
        %v1031 = vadd.f32 %v1029, %v921
        %v1032 = vadd.f32 %v1030, %v925
        %vm1033 = vcmask 64512
        %v1034 = vsel %vm1033, %v1031, -inf
        %1035 = vmax.xlane.f32.xlu0 %v1034
        %v1036 = vpop.xlane.xlu0 %1035
        %v1037 = vsel %vm1033, %v1032, -inf
        %1038 = vmax.xlane.f32.xlu0 %v1037
        %v1039 = vpop.xlane.xlu0 %1038
        %v1040 = vsub.f32 %v1031, %v1036
        %v1041 = vsub.f32 %v1032, %v1039
        %v1042 = vmul.f32 %v1040, 1.442695
        %v1043 = vpow.pop %v1042
        %v1044 = vmul.f32 %v1041, 1.442695
        %v1045 = vpow.pop %v1044
        %v1046 = vsel %vm1033, %v1043, 0.0
        %1047 = vadd.xlane.f32.xlu0 %v1046
        %v1048 = vpop.xlane.xlu0 %1047
        %v1049 = vsel %vm1033, %v1045, 0.0
        %1050 = vadd.xlane.f32.xlu0 %v1049
        %v1051 = vpop.xlane.xlu0 %1050
        %v1052 = vrcp.pop %v1048
        %v1053 = vrcp.pop %v1051
        %v1054 = vmul.f32 %v1043, %v1052
        %v1055 = vmul.f32 %v1045, %v1053
        %v1056 = vpack.c.bf16 %v1054, %v1054
        %v1057 = vpack.c.bf16 %v1055, %v1055
        %1058 = vrot.lane.b32.xlu0 %v928, 64
        %v1059 = vpop.permute.xlu0 %1058
        %v1061 = vsel %vm1033, %v1056, 0
        %vm1063 = vcmask 1043456
        %v1065 = vsel %vm1063, %v1059, 0
        %1067 = vmatprep.subr.bf16.mxu0 0
        %1068 = vmatpush1.bf16.msra.mxu0 %v1065
        %1069 = vmatprep.subr.bf16.mxu0 0
        %1070 = vmatpush1.bf16.msra.mxu0 0
        %1071 = vmatprep.subr.bf16.mxu0 0
        %1072 = vmatpush1.bf16.msra.mxu0 0
        %1073 = vmatprep.subr.bf16.mxu0 0
        %1074 = vmatpush1.bf16.msra.mxu0 0
        %1075 = vmatprep.subr.bf16.mxu0 0
        %1076 = vmatpush1.bf16.msra.mxu0 0
        %1077 = vmatprep.subr.bf16.mxu0 0
        %1078 = vmatpush1.bf16.msra.mxu0 0
        %1079 = vmatprep.subr.bf16.mxu0 0
        %1080 = vmatpush1.bf16.msra.mxu0 0
        %1081 = vmatprep.subr.bf16.mxu0 0
        %1082 = vmatpush1.bf16.msra.mxu0 0
        %1083 = vmatprep.subr.bf16.mxu0 0
        %1084 = vmatpush1.bf16.msra.mxu0 0
        %1085 = vmatprep.subr.bf16.mxu0 0
        %1086 = vmatpush1.bf16.msra.mxu0 0
        %1087 = vmatprep.subr.bf16.mxu0 0
        %1088 = vmatpush1.bf16.msra.mxu0 0
        %1089 = vmatprep.subr.bf16.mxu0 0
        %1090 = vmatpush1.bf16.msra.mxu0 0
        %1091 = vmatprep.subr.bf16.mxu0 0
        %1092 = vmatpush1.bf16.msra.mxu0 0
        %1093 = vmatprep.subr.bf16.mxu0 0
        %1094 = vmatpush1.bf16.msra.mxu0 0
        %1095 = vmatprep.subr.bf16.mxu0 0
        %1096 = vmatpush1.bf16.msra.mxu0 0
        %1097 = vmatprep.subr.bf16.mxu0 0
        %1098 = vmatpush1.bf16.msra.mxu0 0
        %1099 = vmatprep.mubr.bf16.mxu0 0
        %1100 = vmatmul.mubr.bf16.gmra.mrb[0].mxu0 %v1061
        %v1101 = vpop.f32.mrb[0].mxu0
        %v1102 = vadd.f32 0.0, %v1101
        %v1103 = vpop.f32.mrb[0].mxu0
        %v1104 = vpop.f32.mrb[0].mxu0
        %v1105 = vpop.f32.mrb[0].mxu0
        %1106 = vdwg.mxu0
        %1107 = vrot.lane.b32.xlu0 %v929, 64
        %v1108 = vpop.permute.xlu0 %1107
        %v1110 = vsel %vm1033, %v1057, 0
        %v1113 = vsel %vm1063, %v1108, 0
        %1115 = vmatprep.subr.bf16.mxu0 0
        %1116 = vmatpush1.bf16.msra.mxu0 %v1113
        %1117 = vmatprep.subr.bf16.mxu0 0
        %1118 = vmatpush1.bf16.msra.mxu0 0
        %1119 = vmatprep.subr.bf16.mxu0 0
        %1120 = vmatpush1.bf16.msra.mxu0 0
        %1121 = vmatprep.subr.bf16.mxu0 0
        %1122 = vmatpush1.bf16.msra.mxu0 0
        %1123 = vmatprep.subr.bf16.mxu0 0
        %1124 = vmatpush1.bf16.msra.mxu0 0
        %1125 = vmatprep.subr.bf16.mxu0 0
        %1126 = vmatpush1.bf16.msra.mxu0 0
        %1127 = vmatprep.subr.bf16.mxu0 0
        %1128 = vmatpush1.bf16.msra.mxu0 0
        %1129 = vmatprep.subr.bf16.mxu0 0
        %1130 = vmatpush1.bf16.msra.mxu0 0
        %1131 = vmatprep.subr.bf16.mxu0 0
        %1132 = vmatpush1.bf16.msra.mxu0 0
        %1133 = vmatprep.subr.bf16.mxu0 0
        %1134 = vmatpush1.bf16.msra.mxu0 0
        %1135 = vmatprep.subr.bf16.mxu0 0
        %1136 = vmatpush1.bf16.msra.mxu0 0
        %1137 = vmatprep.subr.bf16.mxu0 0
        %1138 = vmatpush1.bf16.msra.mxu0 0
        %1139 = vmatprep.subr.bf16.mxu0 0
        %1140 = vmatpush1.bf16.msra.mxu0 0
        %1141 = vmatprep.subr.bf16.mxu0 0
        %1142 = vmatpush1.bf16.msra.mxu0 0
        %1143 = vmatprep.subr.bf16.mxu0 0
        %1144 = vmatpush1.bf16.msra.mxu0 0
        %1145 = vmatprep.subr.bf16.mxu0 0
        %1146 = vmatpush1.bf16.msra.mxu0 0
        %1147 = vmatprep.mubr.bf16.mxu0 0
        %1148 = vmatmul.mubr.bf16.gmra.mrb[0].mxu0 %v1110
        %v1149 = vpop.f32.mrb[0].mxu0
        %v1150 = vadd.f32 0.0, %v1149
        %v1151 = vpop.f32.mrb[0].mxu0
        %v1152 = vpop.f32.mrb[0].mxu0
        %v1153 = vpop.f32.mrb[0].mxu0
        %1154 = vdwg.mxu0
        %1155 = vrot.lane.b32.xlu0 %v928, 112
        %v1156 = vpop.permute.xlu0 %1155
        %1157 = vrot.lane.b32.xlu0 %v928, 80
        %v1158 = vpop.permute.xlu0 %1157
        %v1160 = vsel %vm933, %v1156, 0
        %v1163 = vsel %vm933, %v1158, 0
        %1165 = vmatprep.subr.bf16.mxu0 0
        %1166 = vmatpush1.bf16.xpose.msra.mxu0 %v1163
        %1167 = vmatprep.subr.bf16.mxu0 0
        %1168 = vmatpush1.bf16.xpose.msra.mxu0 0
        %1169 = vmatprep.subr.bf16.mxu0 0
        %1170 = vmatpush1.bf16.xpose.msra.mxu0 0
        %1171 = vmatprep.subr.bf16.mxu0 0
        %1172 = vmatpush1.bf16.xpose.msra.mxu0 0
        %1173 = vmatprep.subr.bf16.mxu0 0
        %1174 = vmatpush1.bf16.xpose.msra.mxu0 0
        %1175 = vmatprep.subr.bf16.mxu0 0
        %1176 = vmatpush1.bf16.xpose.msra.mxu0 0
        %1177 = vmatprep.subr.bf16.mxu0 0
        %1178 = vmatpush1.bf16.xpose.msra.mxu0 0
        %1179 = vmatprep.subr.bf16.mxu0 0
        %1180 = vmatpush1.bf16.xpose.msra.mxu0 0
        %1181 = vmatprep.subr.bf16.mxu0 0
        %1182 = vmatpush1.bf16.xpose.msra.mxu0 0
        %1183 = vmatprep.subr.bf16.mxu0 0
        %1184 = vmatpush1.bf16.xpose.msra.mxu0 0
        %1185 = vmatprep.subr.bf16.mxu0 0
        %1186 = vmatpush1.bf16.xpose.msra.mxu0 0
        %1187 = vmatprep.subr.bf16.mxu0 0
        %1188 = vmatpush1.bf16.xpose.msra.mxu0 0
        %1189 = vmatprep.subr.bf16.mxu0 0
        %1190 = vmatpush1.bf16.xpose.msra.mxu0 0
        %1191 = vmatprep.subr.bf16.mxu0 0
        %1192 = vmatpush1.bf16.xpose.msra.mxu0 0
        %1193 = vmatprep.subr.bf16.mxu0 0
        %1194 = vmatpush1.bf16.xpose.msra.mxu0 0
        %1195 = vmatprep.subr.bf16.mxu0 0
        %1196 = vmatpush1.bf16.xpose.msra.mxu0 0
        %1197 = vmatprep.mubr.bf16.mxu0 0
        %1198 = vmatmul.mubr.bf16.gmra.mrb[0].mxu0 %v1160
        %v1199 = vpop.f32.mrb[0].mxu0
        %v1200 = vadd.f32 0.0, %v1199
        %v1201 = vpop.f32.mrb[0].mxu0
        %v1202 = vpop.f32.mrb[0].mxu0
        %v1203 = vpop.f32.mrb[0].mxu0
        %1204 = vdwg.mxu0
        %1205 = vrot.lane.b32.xlu0 %v929, 112
        %v1206 = vpop.permute.xlu0 %1205
        %1207 = vrot.lane.b32.xlu0 %v929, 80
        %v1208 = vpop.permute.xlu0 %1207
        %v1210 = vsel %vm933, %v1206, 0
        %v1213 = vsel %vm933, %v1208, 0
        %1215 = vmatprep.subr.bf16.mxu0 0
        %1216 = vmatpush1.bf16.xpose.msra.mxu0 %v1213
        %1217 = vmatprep.subr.bf16.mxu0 0
        %1218 = vmatpush1.bf16.xpose.msra.mxu0 0
        %1219 = vmatprep.subr.bf16.mxu0 0
        %1220 = vmatpush1.bf16.xpose.msra.mxu0 0
        %1221 = vmatprep.subr.bf16.mxu0 0
        %1222 = vmatpush1.bf16.xpose.msra.mxu0 0
        %1223 = vmatprep.subr.bf16.mxu0 0
        %1224 = vmatpush1.bf16.xpose.msra.mxu0 0
        %1225 = vmatprep.subr.bf16.mxu0 0
        %1226 = vmatpush1.bf16.xpose.msra.mxu0 0
        %1227 = vmatprep.subr.bf16.mxu0 0
        %1228 = vmatpush1.bf16.xpose.msra.mxu0 0
        %1229 = vmatprep.subr.bf16.mxu0 0
        %1230 = vmatpush1.bf16.xpose.msra.mxu0 0
        %1231 = vmatprep.subr.bf16.mxu0 0
        %1232 = vmatpush1.bf16.xpose.msra.mxu0 0
        %1233 = vmatprep.subr.bf16.mxu0 0
        %1234 = vmatpush1.bf16.xpose.msra.mxu0 0
        %1235 = vmatprep.subr.bf16.mxu0 0
        %1236 = vmatpush1.bf16.xpose.msra.mxu0 0
        %1237 = vmatprep.subr.bf16.mxu0 0
        %1238 = vmatpush1.bf16.xpose.msra.mxu0 0
        %1239 = vmatprep.subr.bf16.mxu0 0
        %1240 = vmatpush1.bf16.xpose.msra.mxu0 0
        %1241 = vmatprep.subr.bf16.mxu0 0
        %1242 = vmatpush1.bf16.xpose.msra.mxu0 0
        %1243 = vmatprep.subr.bf16.mxu0 0
        %1244 = vmatpush1.bf16.xpose.msra.mxu0 0
        %1245 = vmatprep.subr.bf16.mxu0 0
        %1246 = vmatpush1.bf16.xpose.msra.mxu0 0
        %1247 = vmatprep.mubr.bf16.mxu0 0
        %1248 = vmatmul.mubr.bf16.gmra.mrb[0].mxu0 %v1210
        %v1249 = vpop.f32.mrb[0].mxu0
        %v1250 = vadd.f32 0.0, %v1249
        %v1251 = vpop.f32.mrb[0].mxu0
        %v1252 = vpop.f32.mrb[0].mxu0
        %v1253 = vpop.f32.mrb[0].mxu0
        %1254 = vdwg.mxu0
        %v1255 = vmul.f32 %v1200, 0.25
        %v1256 = vmul.f32 %v1250, 0.25
        %v1257 = vadd.f32 %v1255, %v921
        %v1258 = vadd.f32 %v1256, %v925
        %v1259 = vsel %vm1033, %v1257, -inf
        %1260 = vmax.xlane.f32.xlu0 %v1259
        %v1261 = vpop.xlane.xlu0 %1260
        %v1262 = vsel %vm1033, %v1258, -inf
        %1263 = vmax.xlane.f32.xlu0 %v1262
        %v1264 = vpop.xlane.xlu0 %1263
        %v1265 = vsub.f32 %v1257, %v1261
        %v1266 = vsub.f32 %v1258, %v1264
        %v1267 = vmul.f32 %v1265, 1.442695
        %v1268 = vpow.pop %v1267
        %v1269 = vmul.f32 %v1266, 1.442695
        %v1270 = vpow.pop %v1269
        %v1271 = vsel %vm1033, %v1268, 0.0
        %1272 = vadd.xlane.f32.xlu0 %v1271
        %v1273 = vpop.xlane.xlu0 %1272
        %v1274 = vsel %vm1033, %v1270, 0.0
        %1275 = vadd.xlane.f32.xlu0 %v1274
        %v1276 = vpop.xlane.xlu0 %1275
        %v1277 = vrcp.pop %v1273
        %v1278 = vrcp.pop %v1276
        %v1279 = vmul.f32 %v1268, %v1277
        %v1280 = vmul.f32 %v1270, %v1278
        %v1281 = vpack.c.bf16 %v1279, %v1279
        %v1282 = vpack.c.bf16 %v1280, %v1280
        %1283 = vrot.lane.b32.xlu0 %v928, 48
        %v1284 = vpop.permute.xlu0 %1283
        %v1286 = vsel %vm1033, %v1281, 0
        %v1289 = vsel %vm1063, %v1284, 0
        %1291 = vmatprep.subr.bf16.mxu0 0
        %1292 = vmatpush1.bf16.msra.mxu0 %v1289
        %1293 = vmatprep.subr.bf16.mxu0 0
        %1294 = vmatpush1.bf16.msra.mxu0 0
        %1295 = vmatprep.subr.bf16.mxu0 0
        %1296 = vmatpush1.bf16.msra.mxu0 0
        %1297 = vmatprep.subr.bf16.mxu0 0
        %1298 = vmatpush1.bf16.msra.mxu0 0
        %1299 = vmatprep.subr.bf16.mxu0 0
        %1300 = vmatpush1.bf16.msra.mxu0 0
        %1301 = vmatprep.subr.bf16.mxu0 0
        %1302 = vmatpush1.bf16.msra.mxu0 0
        %1303 = vmatprep.subr.bf16.mxu0 0
        %1304 = vmatpush1.bf16.msra.mxu0 0
        %1305 = vmatprep.subr.bf16.mxu0 0
        %1306 = vmatpush1.bf16.msra.mxu0 0
        %1307 = vmatprep.subr.bf16.mxu0 0
        %1308 = vmatpush1.bf16.msra.mxu0 0
        %1309 = vmatprep.subr.bf16.mxu0 0
        %1310 = vmatpush1.bf16.msra.mxu0 0
        %1311 = vmatprep.subr.bf16.mxu0 0
        %1312 = vmatpush1.bf16.msra.mxu0 0
        %1313 = vmatprep.subr.bf16.mxu0 0
        %1314 = vmatpush1.bf16.msra.mxu0 0
        %1315 = vmatprep.subr.bf16.mxu0 0
        %1316 = vmatpush1.bf16.msra.mxu0 0
        %1317 = vmatprep.subr.bf16.mxu0 0
        %1318 = vmatpush1.bf16.msra.mxu0 0
        %1319 = vmatprep.subr.bf16.mxu0 0
        %1320 = vmatpush1.bf16.msra.mxu0 0
        %1321 = vmatprep.subr.bf16.mxu0 0
        %1322 = vmatpush1.bf16.msra.mxu0 0
        %1323 = vmatprep.mubr.bf16.mxu0 0
        %1324 = vmatmul.mubr.bf16.gmra.mrb[0].mxu0 %v1286
        %v1325 = vpop.f32.mrb[0].mxu0
        %v1326 = vadd.f32 0.0, %v1325
        %v1327 = vpop.f32.mrb[0].mxu0
        %v1328 = vpop.f32.mrb[0].mxu0
        %v1329 = vpop.f32.mrb[0].mxu0
        %1330 = vdwg.mxu0
        %1331 = vrot.lane.b32.xlu0 %v929, 48
        %v1332 = vpop.permute.xlu0 %1331
        %v1334 = vsel %vm1033, %v1282, 0
        %v1337 = vsel %vm1063, %v1332, 0
        %1339 = vmatprep.subr.bf16.mxu0 0
        %1340 = vmatpush1.bf16.msra.mxu0 %v1337
        %1341 = vmatprep.subr.bf16.mxu0 0
        %1342 = vmatpush1.bf16.msra.mxu0 0
        %1343 = vmatprep.subr.bf16.mxu0 0
        %1344 = vmatpush1.bf16.msra.mxu0 0
        %1345 = vmatprep.subr.bf16.mxu0 0
        %1346 = vmatpush1.bf16.msra.mxu0 0
        %1347 = vmatprep.subr.bf16.mxu0 0
        %1348 = vmatpush1.bf16.msra.mxu0 0
        %1349 = vmatprep.subr.bf16.mxu0 0
        %1350 = vmatpush1.bf16.msra.mxu0 0
        %1351 = vmatprep.subr.bf16.mxu0 0
        %1352 = vmatpush1.bf16.msra.mxu0 0
        %1353 = vmatprep.subr.bf16.mxu0 0
        %1354 = vmatpush1.bf16.msra.mxu0 0
        %1355 = vmatprep.subr.bf16.mxu0 0
        %1356 = vmatpush1.bf16.msra.mxu0 0
        %1357 = vmatprep.subr.bf16.mxu0 0
        %1358 = vmatpush1.bf16.msra.mxu0 0
        %1359 = vmatprep.subr.bf16.mxu0 0
        %1360 = vmatpush1.bf16.msra.mxu0 0
        %1361 = vmatprep.subr.bf16.mxu0 0
        %1362 = vmatpush1.bf16.msra.mxu0 0
        %1363 = vmatprep.subr.bf16.mxu0 0
        %1364 = vmatpush1.bf16.msra.mxu0 0
        %1365 = vmatprep.subr.bf16.mxu0 0
        %1366 = vmatpush1.bf16.msra.mxu0 0
        %1367 = vmatprep.subr.bf16.mxu0 0
        %1368 = vmatpush1.bf16.msra.mxu0 0
        %1369 = vmatprep.subr.bf16.mxu0 0
        %1370 = vmatpush1.bf16.msra.mxu0 0
        %1371 = vmatprep.mubr.bf16.mxu0 0
        %1372 = vmatmul.mubr.bf16.gmra.mrb[0].mxu0 %v1334
        %v1373 = vpop.f32.mrb[0].mxu0
        %v1374 = vadd.f32 0.0, %v1373
        %v1375 = vpop.f32.mrb[0].mxu0
        %v1376 = vpop.f32.mrb[0].mxu0
        %v1377 = vpop.f32.mrb[0].mxu0
        %1378 = vdwg.mxu0
        %1381 = vrot.lane.b32.xlu0 %v1326, 16
        %v1382 = vpop.permute.xlu0 %1381
        %1383 = vrot.lane.b32.xlu0 %v1374, 16
        %v1384 = vpop.permute.xlu0 %1383
        %v1387 = vsel %vm933, %v1102, %v1382
        %v1388 = vsel %vm933, %v1150, %v1384
        %v1389 = vpack.c.bf16 %v1388, %v1387
        %v1390 = vld [vmem:[%s756] sm:$0xf]
        %v1391 = vld [vmem:[%s756 + $0x4] sm:$0xf]
        %v1392 = vld [vmem:[%s756 + $0x8] sm:$0xf]
        %v1393 = vld [vmem:[%s756 + $0xc] sm:$0xf]
        %v1394 = vld [vmem:[%s759] sm:$0x1]
        %v1396 = vlaneseq
        %v1397 = vshrl.u32 %v1396, 7
        %v1398 = vsub.s32 0, %v1397
        %v1399 = vrot.slane %v1394, %v1398
        %v1405 = vunpack.c.l.b16 %v1390
        %v1406 = vunpack.c.l.b16 %v1391
        %v1407 = vunpack.c.l.b16 %v1392
        %v1408 = vunpack.c.l.b16 %v1393
        %v1409 = vpack.c.b16 %v1406, %v1405
        %v1410 = vpack.c.b16 %v1408, %v1407
        %v1414 = vsel %vm869, %v1389, 0
        %1416 = vmatprep.subr.bf16.mxu0 0
        %1417 = vmatpush1.bf16.msra.mxu0 %v1409
        %1418 = vmatprep.subr.bf16.mxu0 0
        %1419 = vmatpush1.bf16.msra.mxu0 %v1410
        %1420 = vmatprep.subr.bf16.mxu0 0
        %1421 = vmatpush1.bf16.msra.mxu0 0
        %1422 = vmatprep.subr.bf16.mxu0 0
        %1423 = vmatpush1.bf16.msra.mxu0 0
        %1424 = vmatprep.subr.bf16.mxu0 0
        %1425 = vmatpush1.bf16.msra.mxu0 0
        %1426 = vmatprep.subr.bf16.mxu0 0
        %1427 = vmatpush1.bf16.msra.mxu0 0
        %1428 = vmatprep.subr.bf16.mxu0 0
        %1429 = vmatpush1.bf16.msra.mxu0 0
        %1430 = vmatprep.subr.bf16.mxu0 0
        %1431 = vmatpush1.bf16.msra.mxu0 0
        %1432 = vmatprep.subr.bf16.mxu0 0
        %1433 = vmatpush1.bf16.msra.mxu0 0
        %1434 = vmatprep.subr.bf16.mxu0 0
        %1435 = vmatpush1.bf16.msra.mxu0 0
        %1436 = vmatprep.subr.bf16.mxu0 0
        %1437 = vmatpush1.bf16.msra.mxu0 0
        %1438 = vmatprep.subr.bf16.mxu0 0
        %1439 = vmatpush1.bf16.msra.mxu0 0
        %1440 = vmatprep.subr.bf16.mxu0 0
        %1441 = vmatpush1.bf16.msra.mxu0 0
        %1442 = vmatprep.subr.bf16.mxu0 0
        %1443 = vmatpush1.bf16.msra.mxu0 0
        %1444 = vmatprep.subr.bf16.mxu0 0
        %1445 = vmatpush1.bf16.msra.mxu0 0
        %1446 = vmatprep.subr.bf16.mxu0 0
        %1447 = vmatpush1.bf16.msra.mxu0 0
        %1448 = vmatprep.mubr.bf16.mxu0 0
        %1449 = vmatmul.mubr.bf16.gmra.mrb[0].mxu0 %v1414
        %v1450 = vpop.f32.mrb[0].mxu0
        %v1451 = vadd.f32 %v1399, %v1450
        %v1452 = vpop.f32.mrb[0].mxu0
        %v1453 = vpop.f32.mrb[0].mxu0
        %v1454 = vadd.f32 %v1399, %v1453
        %v1455 = vpop.f32.mrb[0].mxu0
        %1456 = vdwg.mxu0
        %v1457 = vadd.f32 %v1451, %v843
        %v1458 = vadd.f32 %v1454, %v844
        %v1459 = vld [vmem:[%s762] sm:$0x1]
        %v1460 = vld [vmem:[%s765] sm:$0x1]
        %v1461 = vsel %vm869, %v1457, 0.0
        %1462 = vadd.xlane.f32.xlu0 %v1461
        %v1463 = vpop.xlane.xlu0 %1462
        %v1464 = vsel %vm869, %v1458, 0.0
        %1465 = vadd.xlane.f32.xlu0 %v1464
        %v1466 = vpop.xlane.xlu0 %1465
        %v1467 = vrcp.pop 32.0
        %v1468 = vmul.f32 %v1463, %v1467
        %v1469 = vmul.f32 %v1466, %v1467
        %v1470 = vsub.f32 %v1457, %v1468
        %v1471 = vsub.f32 %v1458, %v1469
        %v1472 = vmul.f32 %v1470, %v1470
        %v1473 = vmul.f32 %v1471, %v1471
        %v1474 = vsel %vm869, %v1472, 0.0
        %1475 = vadd.xlane.f32.xlu0 %v1474
        %v1476 = vpop.xlane.xlu0 %1475
        %v1477 = vsel %vm869, %v1473, 0.0
        %1478 = vadd.xlane.f32.xlu0 %v1477
        %v1479 = vpop.xlane.xlu0 %1478
        %v1480 = vmul.f32 %v1476, %v1467
        %v1481 = vmul.f32 %v1479, %v1467
        %v1482 = vadd.f32 %v1480, 1e-12
        %v1483 = vadd.f32 %v1481, 1e-12
        %v1484 = vrsqrt.pop %v1482
        %v1485 = vrsqrt.pop %v1483
        %v1486 = vmul.f32 %v1470, %v1484
        %v1487 = vmul.f32 %v1471, %v1485
        %v1489 = vlaneseq
        %v1490 = vshrl.u32 %v1489, 7
        %v1491 = vsub.s32 0, %v1490
        %v1492 = vrot.slane %v1459, %v1491
        %v1494 = vmul.f32 %v1486, %v1492
        %v1495 = vmul.f32 %v1487, %v1492
        %v1497 = vlaneseq
        %v1498 = vshrl.u32 %v1497, 7
        %v1499 = vsub.s32 0, %v1498
        %v1500 = vrot.slane %v1460, %v1499
        %v1502 = vadd.f32 %v1494, %v1500
        %v1503 = vadd.f32 %v1495, %v1500
        %v1504 = vpack.c.bf16 %v1503, %v1502
        %v1505 = vld [vmem:[%s770] sm:$0xf]
        %v1506 = vld [vmem:[%s770 + $0x4] sm:$0xf]
        %v1507 = vld [vmem:[%s770 + $0x8] sm:$0xf]
        %v1508 = vld [vmem:[%s770 + $0xc] sm:$0xf]
        %v1509 = vld [vmem:[%s773] sm:$0x1]
        %v1511 = vlaneseq
        %v1512 = vshrl.u32 %v1511, 7
        %v1513 = vsub.s32 0, %v1512
        %v1514 = vrot.slane %v1509, %v1513
        %v1520 = vunpack.c.l.b16 %v1505
        %v1521 = vunpack.c.l.b16 %v1506
        %v1522 = vunpack.c.l.b16 %v1507
        %v1523 = vunpack.c.l.b16 %v1508
        %v1524 = vpack.c.b16 %v1521, %v1520
        %v1525 = vpack.c.b16 %v1523, %v1522
        %v1529 = vsel %vm869, %v1504, 0
        %1531 = vmatprep.subr.bf16.mxu0 0
        %1532 = vmatpush1.bf16.msra.mxu0 %v1524
        %1533 = vmatprep.subr.bf16.mxu0 0
        %1534 = vmatpush1.bf16.msra.mxu0 %v1525
        %1535 = vmatprep.subr.bf16.mxu0 0
        %1536 = vmatpush1.bf16.msra.mxu0 0
        %1537 = vmatprep.subr.bf16.mxu0 0
        %1538 = vmatpush1.bf16.msra.mxu0 0
        %1539 = vmatprep.subr.bf16.mxu0 0
        %1540 = vmatpush1.bf16.msra.mxu0 0
        %1541 = vmatprep.subr.bf16.mxu0 0
        %1542 = vmatpush1.bf16.msra.mxu0 0
        %1543 = vmatprep.subr.bf16.mxu0 0
        %1544 = vmatpush1.bf16.msra.mxu0 0
        %1545 = vmatprep.subr.bf16.mxu0 0
        %1546 = vmatpush1.bf16.msra.mxu0 0
        %1547 = vmatprep.subr.bf16.mxu0 0
        %1548 = vmatpush1.bf16.msra.mxu0 0
        %1549 = vmatprep.subr.bf16.mxu0 0
        %1550 = vmatpush1.bf16.msra.mxu0 0
        %1551 = vmatprep.subr.bf16.mxu0 0
        %1552 = vmatpush1.bf16.msra.mxu0 0
        %1553 = vmatprep.subr.bf16.mxu0 0
        %1554 = vmatpush1.bf16.msra.mxu0 0
        %1555 = vmatprep.subr.bf16.mxu0 0
        %1556 = vmatpush1.bf16.msra.mxu0 0
        %1557 = vmatprep.subr.bf16.mxu0 0
        %1558 = vmatpush1.bf16.msra.mxu0 0
        %1559 = vmatprep.subr.bf16.mxu0 0
        %1560 = vmatpush1.bf16.msra.mxu0 0
        %1561 = vmatprep.subr.bf16.mxu0 0
        %1562 = vmatpush1.bf16.msra.mxu0 0
        %1563 = vmatprep.mubr.bf16.mxu0 0
        %1564 = vmatmul.mubr.bf16.gmra.mrb[0].mxu0 %v1529
        %v1565 = vpop.f32.mrb[0].mxu0
        %v1566 = vadd.f32 %v1514, %v1565
        %v1567 = vpop.f32.mrb[0].mxu0
        %v1568 = vpop.f32.mrb[0].mxu0
        %v1569 = vadd.f32 %v1514, %v1568
        %v1570 = vpop.f32.mrb[0].mxu0
        %1571 = vdwg.mxu0
        %v1572 = vmul.f32 %v1566, %v1566
        %v1573 = vmul.f32 %v1569, %v1569
        %v1574 = vmul.f32 %v1566, %v1572
        %v1575 = vmul.f32 %v1569, %v1573
        %v1576 = vmul.f32 %v1574, 0.044715
        %v1577 = vmul.f32 %v1575, 0.044715
        %v1578 = vadd.f32 %v1566, %v1576
        %v1579 = vadd.f32 %v1569, %v1577
        %v1580 = vmul.f32 %v1578, 0.7978846
        %v1581 = vmul.f32 %v1579, 0.7978846
        %v1582 = vtanh.pop %v1580
        %v1583 = vtanh.pop %v1581
        %v1584 = vadd.f32 %v1582, 1.0
        %v1585 = vadd.f32 %v1583, 1.0
        %v1586 = vmul.f32 %v1584, 0.5
        %v1587 = vmul.f32 %v1585, 0.5
        %v1588 = vmul.f32 %v1566, %v1586
        %v1589 = vmul.f32 %v1569, %v1587
        %v1590 = vpack.c.bf16 %v1589, %v1588
        %v1591 = vld [vmem:[%s778] sm:$0xf]
        %v1592 = vld [vmem:[%s778 + $0x4] sm:$0xf]
        %v1593 = vld [vmem:[%s778 + $0x8] sm:$0xf]
        %v1594 = vld [vmem:[%s778 + $0xc] sm:$0xf]
        %v1595 = vld [vmem:[%s778 + $0x10] sm:$0xf]
        %v1596 = vld [vmem:[%s778 + $0x14] sm:$0xf]
        %v1597 = vld [vmem:[%s778 + $0x18] sm:$0xf]
        %v1598 = vld [vmem:[%s778 + $0x1c] sm:$0xf]
        %v1599 = vld [vmem:[%s778 + $0x20] sm:$0xf]
        %v1600 = vld [vmem:[%s778 + $0x24] sm:$0xf]
        %v1601 = vld [vmem:[%s778 + $0x28] sm:$0xf]
        %v1602 = vld [vmem:[%s778 + $0x2c] sm:$0xf]
        %v1603 = vld [vmem:[%s778 + $0x30] sm:$0xf]
        %v1604 = vld [vmem:[%s778 + $0x34] sm:$0xf]
        %v1605 = vld [vmem:[%s778 + $0x38] sm:$0xf]
        %v1606 = vld [vmem:[%s778 + $0x3c] sm:$0xf]
        %v1607 = vld [vmem:[%s781] sm:$0x1]
        %v1609 = vlaneseq
        %v1610 = vshrl.u32 %v1609, 7
        %v1611 = vsub.s32 0, %v1610
        %v1612 = vrot.slane %v1607, %v1611
        %v1630 = vunpack.c.l.b16 %v1591
        %v1631 = vunpack.c.l.b16 %v1592
        %v1632 = vunpack.c.l.b16 %v1593
        %v1633 = vunpack.c.l.b16 %v1594
        %v1634 = vunpack.c.l.b16 %v1595
        %v1635 = vunpack.c.l.b16 %v1596
        %v1636 = vunpack.c.l.b16 %v1597
        %v1637 = vunpack.c.l.b16 %v1598
        %v1638 = vunpack.c.l.b16 %v1599
        %v1639 = vunpack.c.l.b16 %v1600
        %v1640 = vunpack.c.l.b16 %v1601
        %v1641 = vunpack.c.l.b16 %v1602
        %v1642 = vunpack.c.l.b16 %v1603
        %v1643 = vunpack.c.l.b16 %v1604
        %v1644 = vunpack.c.l.b16 %v1605
        %v1645 = vunpack.c.l.b16 %v1606
        %v1646 = vpack.c.b16 %v1631, %v1630
        %v1647 = vpack.c.b16 %v1633, %v1632
        %v1648 = vpack.c.b16 %v1635, %v1634
        %v1649 = vpack.c.b16 %v1637, %v1636
        %v1650 = vpack.c.b16 %v1639, %v1638
        %v1651 = vpack.c.b16 %v1641, %v1640
        %v1652 = vpack.c.b16 %v1643, %v1642
        %v1653 = vpack.c.b16 %v1645, %v1644
        %1662 = vmatprep.subr.bf16.mxu0 0
        %1663 = vmatpush1.bf16.msra.mxu0 %v1646
        %1664 = vmatprep.subr.bf16.mxu0 0
        %1665 = vmatpush1.bf16.msra.mxu0 %v1647
        %1666 = vmatprep.subr.bf16.mxu0 0
        %1667 = vmatpush1.bf16.msra.mxu0 %v1648
        %1668 = vmatprep.subr.bf16.mxu0 0
        %1669 = vmatpush1.bf16.msra.mxu0 %v1649
        %1670 = vmatprep.subr.bf16.mxu0 0
        %1671 = vmatpush1.bf16.msra.mxu0 %v1650
        %1672 = vmatprep.subr.bf16.mxu0 0
        %1673 = vmatpush1.bf16.msra.mxu0 %v1651
        %1674 = vmatprep.subr.bf16.mxu0 0
        %1675 = vmatpush1.bf16.msra.mxu0 %v1652
        %1676 = vmatprep.subr.bf16.mxu0 0
        %1677 = vmatpush1.bf16.msra.mxu0 %v1653
        %1678 = vmatprep.subr.bf16.mxu0 0
        %1679 = vmatpush1.bf16.msra.mxu0 0
        %1680 = vmatprep.subr.bf16.mxu0 0
        %1681 = vmatpush1.bf16.msra.mxu0 0
        %1682 = vmatprep.subr.bf16.mxu0 0
        %1683 = vmatpush1.bf16.msra.mxu0 0
        %1684 = vmatprep.subr.bf16.mxu0 0
        %1685 = vmatpush1.bf16.msra.mxu0 0
        %1686 = vmatprep.subr.bf16.mxu0 0
        %1687 = vmatpush1.bf16.msra.mxu0 0
        %1688 = vmatprep.subr.bf16.mxu0 0
        %1689 = vmatpush1.bf16.msra.mxu0 0
        %1690 = vmatprep.subr.bf16.mxu0 0
        %1691 = vmatpush1.bf16.msra.mxu0 0
        %1692 = vmatprep.subr.bf16.mxu0 0
        %1693 = vmatpush1.bf16.msra.mxu0 0
        %1694 = vmatprep.mubr.bf16.mxu0 0
        %1695 = vmatmul.mubr.bf16.gmra.mrb[0].mxu0 %v1590
        %v1696 = vpop.f32.mrb[0].mxu0
        %v1697 = vadd.f32 %v1612, %v1696
        %v1698 = vpop.f32.mrb[0].mxu0
        %v1699 = vpop.f32.mrb[0].mxu0
        %v1700 = vadd.f32 %v1612, %v1699
        %v1701 = vpop.f32.mrb[0].mxu0
        %1702 = vdwg.mxu0
        %v1703 = vadd.f32 %v1697, %v1502
        %v1704 = vadd.f32 %v1700, %v1503
        %v1705 = vld [vmem:[%s784] sm:$0x1]
        %v1706 = vld [vmem:[%s787] sm:$0x1]
        %v1707 = vsel %vm869, %v1703, 0.0
        %1708 = vadd.xlane.f32.xlu0 %v1707
        %v1709 = vpop.xlane.xlu0 %1708
        %v1710 = vsel %vm869, %v1704, 0.0
        %1711 = vadd.xlane.f32.xlu0 %v1710
        %v1712 = vpop.xlane.xlu0 %1711
        %v1713 = vmul.f32 %v1709, %v1467
        %v1714 = vmul.f32 %v1712, %v1467
        %v1715 = vsub.f32 %v1703, %v1713
        %v1716 = vsub.f32 %v1704, %v1714
        %v1717 = vmul.f32 %v1715, %v1715
        %v1718 = vmul.f32 %v1716, %v1716
        %v1719 = vsel %vm869, %v1717, 0.0
        %1720 = vadd.xlane.f32.xlu0 %v1719
        %v1721 = vpop.xlane.xlu0 %1720
        %v1722 = vsel %vm869, %v1718, 0.0
        %1723 = vadd.xlane.f32.xlu0 %v1722
        %v1724 = vpop.xlane.xlu0 %1723
        %v1725 = vmul.f32 %v1721, %v1467
        %v1726 = vmul.f32 %v1724, %v1467
        %v1727 = vadd.f32 %v1725, 1e-12
        %v1728 = vadd.f32 %v1726, 1e-12
        %v1729 = vrsqrt.pop %v1727
        %v1730 = vrsqrt.pop %v1728
        %v1731 = vmul.f32 %v1715, %v1729
        %v1732 = vmul.f32 %v1716, %v1730
        %v1734 = vlaneseq
        %v1735 = vshrl.u32 %v1734, 7
        %v1736 = vsub.s32 0, %v1735
        %v1737 = vrot.slane %v1705, %v1736
        %v1739 = vmul.f32 %v1731, %v1737
        %v1740 = vmul.f32 %v1732, %v1737
        %v1742 = vlaneseq
        %v1743 = vshrl.u32 %v1742, 7
        %v1744 = vsub.s32 0, %v1743
        %v1745 = vrot.slane %v1706, %v1744
        %v1747 = vadd.f32 %v1739, %v1745
        %v1748 = vadd.f32 %v1740, %v1745
        %1749 = vst.msk [vmem:[#allocation2] sm:$0xff] %vm869, %v1747
        %1750 = vst.msk [vmem:[#allocation2 + $0x8] sm:$0xff] %vm869, %v1748
        %p1751 = scmp.eq.s32.totalorder %s32, 1
        // Predicated region
        $region105: #{sentence_classifier_forward.1} parent=99 // pred_check
          %p1752 = pneg %p1751
        $region106: #{sentence_classifier_forward.1} parent=99 // pred_check_branch
          %1754 = sbr.rel (%p1752) target = $region108
        $region107: #{sentence_classifier_forward.1} parent=99 // pred_region
          %v1755 = vpack.c.bf16 %v1747, %v1747
          %v1756 = vpack.c.bf16 %v1748, %v1748
          %v1757 = vld [vmem:[%s16] sm:$0xf]
          %v1758 = vld [vmem:[%s16 + $0x4] sm:$0xf]
          %v1759 = vld [vmem:[%s16 + $0x8] sm:$0xf]
          %v1760 = vld [vmem:[%s16 + $0xc] sm:$0xf]
          %v1761 = vld [vmem:[%s17] sm:$0x1]
          %v1763 = vlaneseq
          %v1764 = vshrl.u32 %v1763, 7
          %v1765 = vsub.s32 0, %v1764
          %v1766 = vrot.slane %v1761, %v1765
          %v1770 = vunpack.c.l.b16 %v1755
          %v1771 = vunpack.c.l.b16 %v1756
          %v1772 = vrot.slane %v1771, 7
          %vm1773 = vcmask 1041409
          %v1774 = vsel %vm1773, %v1772, %v1770
          %v1775 = vpack.c.b16 %v1774, %v1774
          %v1780 = vunpack.c.l.b16 %v1757
          %v1781 = vunpack.c.l.b16 %v1758
          %v1782 = vunpack.c.l.b16 %v1759
          %v1783 = vunpack.c.l.b16 %v1760
          %v1784 = vpack.c.b16 %v1781, %v1780
          %v1785 = vpack.c.b16 %v1783, %v1782
          %v1789 = vsel %vm869, %v1775, 0
          %1791 = vmatprep.subr.bf16.mxu0 0
          %1792 = vmatpush1.bf16.msra.mxu0 %v1784
          %1793 = vmatprep.subr.bf16.mxu0 0
          %1794 = vmatpush1.bf16.msra.mxu0 %v1785
          %1795 = vmatprep.subr.bf16.mxu0 0
          %1796 = vmatpush1.bf16.msra.mxu0 0
          %1797 = vmatprep.subr.bf16.mxu0 0
          %1798 = vmatpush1.bf16.msra.mxu0 0
          %1799 = vmatprep.subr.bf16.mxu0 0
          %1800 = vmatpush1.bf16.msra.mxu0 0
          %1801 = vmatprep.subr.bf16.mxu0 0
          %1802 = vmatpush1.bf16.msra.mxu0 0
          %1803 = vmatprep.subr.bf16.mxu0 0
          %1804 = vmatpush1.bf16.msra.mxu0 0
          %1805 = vmatprep.subr.bf16.mxu0 0
          %1806 = vmatpush1.bf16.msra.mxu0 0
          %1807 = vmatprep.subr.bf16.mxu0 0
          %1808 = vmatpush1.bf16.msra.mxu0 0
          %1809 = vmatprep.subr.bf16.mxu0 0
          %1810 = vmatpush1.bf16.msra.mxu0 0
          %1811 = vmatprep.subr.bf16.mxu0 0
          %1812 = vmatpush1.bf16.msra.mxu0 0
          %1813 = vmatprep.subr.bf16.mxu0 0
          %1814 = vmatpush1.bf16.msra.mxu0 0
          %1815 = vmatprep.subr.bf16.mxu0 0
          %1816 = vmatpush1.bf16.msra.mxu0 0
          %1817 = vmatprep.subr.bf16.mxu0 0
          %1818 = vmatpush1.bf16.msra.mxu0 0
          %1819 = vmatprep.subr.bf16.mxu0 0
          %1820 = vmatpush1.bf16.msra.mxu0 0
          %1821 = vmatprep.subr.bf16.mxu0 0
          %1822 = vmatpush1.bf16.msra.mxu0 0
          %1823 = vmatprep.mubr.bf16.mxu0 0
          %1824 = vmatmul.mubr.bf16.gmra.mrb[0].mxu0 %v1789
          %v1825 = vpop.f32.mrb[0].mxu0
          %v1826 = vadd.f32 %v1766, %v1825
          %v1827 = vpop.f32.mrb[0].mxu0
          %v1828 = vpop.f32.mrb[0].mxu0
          %v1829 = vpop.f32.mrb[0].mxu0
          %1830 = vdwg.mxu0
          %v1831 = vtanh.pop %v1826
          %v1832 = vpack.c.bf16 %v1831, %v1831
          %v1833 = vld [vmem:[%s18] sm:$0xf]
          %v1834 = vld [vmem:[%s18 + $0x4] sm:$0xf]
          %v1835 = vld [vmem:[%s18 + $0x8] sm:$0xf]
          %v1836 = vld [vmem:[%s18 + $0xc] sm:$0xf]
          %v1837 = vld [vmem:[%s19] sm:$0x1]
          %v1839 = vlaneseq
          %v1840 = vshrl.u32 %v1839, 7
          %v1841 = vsub.s32 0, %v1840
          %v1842 = vrot.slane %v1837, %v1841
          %v1848 = vunpack.c.l.b16 %v1833
          %v1849 = vunpack.c.l.b16 %v1834
          %v1850 = vunpack.c.l.b16 %v1835
          %v1851 = vunpack.c.l.b16 %v1836
          %v1852 = vpack.c.b16 %v1849, %v1848
          %v1853 = vpack.c.b16 %v1851, %v1850
          %v1857 = vsel %vm869, %v1832, 0
          %1859 = vmatprep.subr.bf16.mxu0 0
          %1860 = vmatpush1.bf16.msra.mxu0 %v1852
          %1861 = vmatprep.subr.bf16.mxu0 0
          %1862 = vmatpush1.bf16.msra.mxu0 %v1853
          %1863 = vmatprep.subr.bf16.mxu0 0
          %1864 = vmatpush1.bf16.msra.mxu0 0
          %1865 = vmatprep.subr.bf16.mxu0 0
          %1866 = vmatpush1.bf16.msra.mxu0 0
          %1867 = vmatprep.subr.bf16.mxu0 0
          %1868 = vmatpush1.bf16.msra.mxu0 0
          %1869 = vmatprep.subr.bf16.mxu0 0
          %1870 = vmatpush1.bf16.msra.mxu0 0
          %1871 = vmatprep.subr.bf16.mxu0 0
          %1872 = vmatpush1.bf16.msra.mxu0 0
          %1873 = vmatprep.subr.bf16.mxu0 0
          %1874 = vmatpush1.bf16.msra.mxu0 0
          %1875 = vmatprep.subr.bf16.mxu0 0
          %1876 = vmatpush1.bf16.msra.mxu0 0
          %1877 = vmatprep.subr.bf16.mxu0 0
          %1878 = vmatpush1.bf16.msra.mxu0 0
          %1879 = vmatprep.subr.bf16.mxu0 0
          %1880 = vmatpush1.bf16.msra.mxu0 0
          %1881 = vmatprep.subr.bf16.mxu0 0
          %1882 = vmatpush1.bf16.msra.mxu0 0
          %1883 = vmatprep.subr.bf16.mxu0 0
          %1884 = vmatpush1.bf16.msra.mxu0 0
          %1885 = vmatprep.subr.bf16.mxu0 0
          %1886 = vmatpush1.bf16.msra.mxu0 0
          %1887 = vmatprep.subr.bf16.mxu0 0
          %1888 = vmatpush1.bf16.msra.mxu0 0
          %1889 = vmatprep.subr.bf16.mxu0 0
          %1890 = vmatpush1.bf16.msra.mxu0 0
          %1891 = vmatprep.mubr.bf16.mxu0 0
          %1892 = vmatmul.mubr.bf16.gmra.mrb[0].mxu0 %v1857
          %v1893 = vpop.f32.mrb[0].mxu0
          %v1894 = vadd.f32 %v1842, %v1893
          %v1895 = vpop.f32.mrb[0].mxu0
          %v1896 = vpop.f32.mrb[0].mxu0
          %v1897 = vpop.f32.mrb[0].mxu0
          %1898 = vdwg.mxu0
          %1899 = vst [vmem:[#allocation3] sm:$0x3] %v1894
        $region108: #{sentence_classifier_forward.1} parent=99 // pred_fallthru
          _
        // Predicated region
        $region109: #{sentence_classifier_forward.1} parent=99 // pred_check
          %p1900 = pneg %p525
        $region110: #{sentence_classifier_forward.1} parent=99 // pred_check_branch
          %1902 = sbr.rel (%p1900) target = $region112
        $region111: #{sentence_classifier_forward.1} parent=99 // pred_region
          %s1904 = ssub.s32 32, 32
          %1905 = vsyncadd [#allocation4], %s1904
          %s1907 = sshll.u32 [#allocation3], 4
          %s1908 = int_to_ptr.vmem [resolvable:$true] %s1907
          %1910 = dma.vmem_to_hbm [thread:$0]  %s1908, 32, %s20, [#allocation4]
        $region112: #{sentence_classifier_forward.1} parent=99 // pred_fallthru
          _
        // Predicated region
        $region113: #{sentence_classifier_forward.1} parent=99 // pred_check
          %p1911 = pneg %p525
        $region114: #{sentence_classifier_forward.1} parent=99 // pred_check_branch
          %1913 = sbr.rel (%p1911) target = $region116
        $region115: #{sentence_classifier_forward.1} parent=99 // pred_region
          %1914 = dma.done [#allocation4], 32
        $region116: #{sentence_classifier_forward.1} parent=99 // pred_fallthru
          _
      $region100: #{sentence_classifier_forward.1} parent=5 // pred_fallthru
        _
      %p1915 = scmp.le.s32.totalorder 2, %s27
      // Predicated region
      $region117: #{sentence_classifier_forward.1} parent=5 // pred_check
        %p1916 = pneg %p1915
      $region118: #{sentence_classifier_forward.1} parent=5 // pred_check_branch
        %1918 = sbr.rel (%p1916) target = $region120
      $region119: #{sentence_classifier_forward.1} parent=5 // pred_region
        %s1919 = ssub.s32 %s27, 2
      $region120: #{sentence_classifier_forward.1} parent=5 // pred_fallthru
        _
    $region6: #{sentence_classifier_forward.1} parent=1 // loop_footer
      %s31 = sadd.s32 1, %s27
    $region7: #{sentence_classifier_forward.1} parent=1 // loop_footer_branch
      %26 = sbr.rel target = $region3
    $region8: #{sentence_classifier_forward.1} parent=1 // loop_exit
      _
    %1920 = vsyncpa [#allocation4], 1
    %s1921 = scalar_lea.sflag [#allocation4], 1
    %1922 = vsyncpa %s1921, 1

</llo_original>
